<compile_context>
chip_gen: v5e
topology: v5e:2x2
jax: 0.10.0
libtpu: 0.0.40
codegen_flags: <defaults>
</compile_context>

<pallas_src>
import functools

import jax
import jax.numpy as jnp
from jax import lax
from jax.experimental import pallas as pl
from jax.experimental.pallas import tpu as pltpu


# ----------------------------------------------------------------------------
# Pallas kernel: context self-attention + fusion + gate (Bt examples per step)
# ----------------------------------------------------------------------------
def _ctx_attn_fuse_kernel(x_ref, qmask_ref, kbias_ref, wbig_ref, bq_ref,
                          vbig_ref, out_ref, *, valid_len):
    bt, L, hp = x_ref.shape
    x = x_ref[...]                                   # (Bt, L, Hp) bf16

    # One wide MXU matmul for [query | fusion_x | gate_x]: x @ [Wc|Wf_t|Wg_t]
    x2d = x.reshape(bt * L, hp)
    proj = jnp.dot(x2d, wbig_ref[...],
                   preferred_element_type=jnp.float32)          # (Bt*L, 3Hp)
    proj = proj.reshape(bt, L, 3 * hp)
    q = proj[:, :, :hp] + bq_ref[...]                           # f32
    x_f = proj[:, :, hp:2 * hp].astype(jnp.bfloat16)            # halve live bytes
    x_g = proj[:, :, 2 * hp:].astype(jnp.bfloat16)

    # attn_logits = q @ memories^T (contract last dims -> no transpose / XLU)
    logits = jnp.einsum("bqd,bkd->bqk", q.astype(jnp.bfloat16), x,
                        preferred_element_type=jnp.float32)     # (Bt, L, L)
    # Additive key bias gated by the query mask: exactly equivalent post-softmax
    # to the reference bias -1e4*(1 - qm*km) for every row (padded rows incl.).
    logits = logits + qmask_ref[...] * kbias_ref[...]
    if valid_len < L:   # static: exclude the Lp-padding keys for all rows
        kidx = lax.broadcasted_iota(jnp.int32, (1, 1, L), 2)
        logits = jnp.where(kidx < valid_len, logits, -1e9)

    # softmax in f32 (v5e has no bf16 VPU/EUP path)
    logits = logits - jnp.max(logits, axis=-1, keepdims=True)
    e = jnp.exp(logits)
    w = e * pl.reciprocal(jnp.sum(e, axis=-1, keepdims=True), approx=True)
    # TODO(synk): for L >~ 512, switch to a KV-tiled online-softmax (extra grid
    # axis + m/l/acc scratch) so the (L, L) temporaries stop scaling VMEM.

    # attn_outputs = weights @ memories
    attned = jnp.einsum("bqk,bkd->bqd", w.astype(jnp.bfloat16), x,
                        preferred_element_type=jnp.float32)     # (Bt, L, Hp)

    # One wide MXU matmul for [fusion_attn | gate_attn]: attned @ [Wf_b|Wg_b]
    a2d = attned.astype(jnp.bfloat16).reshape(bt * L, hp)
    aproj = jnp.dot(a2d, vbig_ref[...],
                    preferred_element_type=jnp.float32)         # (Bt*L, 2Hp)
    aproj = aproj.reshape(bt, L, 2 * hp)
    a_f = aproj[:, :, :hp]
    a_g = aproj[:, :, hp:]

    fused = jnp.tanh(x_f + a_f)
    gate = jax.nn.sigmoid(x_g + a_g)
    res = x.astype(jnp.float32)                     # residual cast only here
    out_ref[...] = (res + gate * (fused - res)).astype(out_ref.dtype)


# ----------------------------------------------------------------------------
# Wrapper helpers
# ----------------------------------------------------------------------------
def _round_up(n, m):
    return ((n + m - 1) // m) * m


def _pad2(w, rows, cols):
    r, c = w.shape
    return jnp.pad(w, ((0, rows - r), (0, cols - c)))


def _vmem_budget_bytes():
    """~75% of physical VMEM (48 MiB on v7x, ~96 MiB on v5e/v6e)."""
    try:
        cap = int(pltpu.get_tpu_info().vmem_capacity_bytes)
    except Exception:
        cap = 64 * 1024 * 1024
    return (cap * 3) // 4


def _block_vmem_bytes(bt, L, hp, out_bytes):
    """Per-grid-step VMEM footprint estimate (intermediates dominate)."""
    stream = 2 * (bt * L * hp * 2            # x tile bf16 (double buffered)
                  + bt * L * hp * out_bytes  # out tile    (double buffered)
                  + 2 * bt * L * 4)          # qmask + kbias tiles
    proj = bt * L * 3 * hp * 4               # f32 wide projection
    soft = 3 * bt * L * L * 4                # logits / e / w (f32)
    attned = bt * L * hp * 4
    aproj = bt * L * 2 * hp * 4
    gates = 3 * bt * L * hp * 4              # fused / gate / residual f32
    xfg = 2 * bt * L * hp * 2                # x_f / x_g bf16
    return stream + proj + soft + attned + aproj + gates + xfg


def _pick_block_b(B, L, hp, out_bytes, budget):
    divisors = [d for d in range(B, 0, -1) if B % d == 0]
    fitting = [d for d in divisors
               if _block_vmem_bytes(d, L, hp, out_bytes) <= budget]
    if not fitting:
        return 1
    for d in fitting:            # prefer grid >= 2 (v7x's two TCs / overlap)
        if B // d >= 2:
            return d
    return fitting[0]


def ctx_attn_fuse(c_outputs, c_mask, wc_t, bc, wf_t, wg_t, *,
                  block_b=None, out_dtype=jnp.float32):
    """c_outputs: (B, L, 2H) f32, c_mask: (B, L). Weights pre-transposed (in, out)."""
    B, L, two_h = c_outputs.shape

    # Lane-dense feature dim; bump odd-128 widths (>128) to a multiple of 256
    # for the 2x256^2 MXUs on v6e/v7x. Zero padding is semantically exact.
    hp = _round_up(two_h, 128)
    if hp > 128 and (hp // 128) % 2 == 1:
        hp = _round_up(hp, 256)

    # Sublane-friendly sequence length (bf16 packs 16 rows per vreg).
    Lp = _round_up(L, 128) if L >= 256 else _round_up(L, 16)

    out_bytes = jnp.dtype(out_dtype).itemsize

    # bf16 MXU operands; accumulation stays f32 inside the kernel.
    x = jnp.pad(c_outputs.astype(jnp.float32),
                ((0, 0), (0, Lp - L), (0, hp - two_h))).astype(jnp.bfloat16)
    m = jnp.pad(c_mask.astype(jnp.float32), ((0, 0), (0, Lp - L)))
    qmask = m.reshape(B, Lp, 1)
    kbias = ((m - 1.0) * 10000.0).reshape(B, 1, Lp)   # -1e4 on masked keys

    # Fused weight blocks (zero padding is exact; pad columns gate to 0).
    w_big = jnp.concatenate(
        [_pad2(wc_t, hp, hp),
         _pad2(wf_t[:two_h], hp, hp),
         _pad2(wg_t[:two_h], hp, hp)], axis=1).astype(jnp.bfloat16)   # (Hp,3Hp)
    v_big = jnp.concatenate(
        [_pad2(wf_t[two_h:], hp, hp),
         _pad2(wg_t[two_h:], hp, hp)], axis=1).astype(jnp.bfloat16)   # (Hp,2Hp)
    bq = jnp.pad(bc.reshape(1, 1, two_h),
                 ((0, 0), (0, 0), (0, hp - two_h))).astype(jnp.float32)

    budget = _vmem_budget_bytes()
    kernel = functools.partial(_ctx_attn_fuse_kernel, valid_len=L)

    def run(single_buffer_weights):
        n_buf = 1 if single_buffer_weights else 2
        weight_bytes = n_buf * ((hp * 3 * hp + hp * 2 * hp) * 2 + hp * 4)
        bt = (block_b if block_b is not None else
              _pick_block_b(B, Lp, hp, out_bytes, budget - weight_bytes))
        assert B % bt == 0, "batch must be divisible by block_b"
        wmode = ({"pipeline_mode": pl.Buffered(1)}
                 if single_buffer_weights else {})
        return pl.pallas_call(
            kernel,
            out_shape=jax.ShapeDtypeStruct((B, Lp, hp), out_dtype),
            grid=(B // bt,),
            in_specs=[
                pl.BlockSpec((bt, Lp, hp), lambda b: (b, 0, 0)),
                pl.BlockSpec((bt, Lp, 1), lambda b: (b, 0, 0)),
                pl.BlockSpec((bt, 1, Lp), lambda b: (b, 0, 0)),
                pl.BlockSpec((hp, 3 * hp), lambda b: (0, 0), **wmode),
                pl.BlockSpec((1, 1, hp), lambda b: (0, 0, 0), **wmode),
                pl.BlockSpec((hp, 2 * hp), lambda b: (0, 0), **wmode),
            ],
            out_specs=pl.BlockSpec((bt, Lp, hp), lambda b: (b, 0, 0)),
            compiler_params=pltpu.CompilerParams(
                dimension_semantics=("parallel",),
                vmem_limit_bytes=int(budget)),
        )(x, qmask, kbias, w_big, bq, v_big)

    try:
        out = run(True)        # single-buffer the grid-invariant weights
    except Exception:
        out = run(False)       # fall back if pipeline_mode/Buffered(1) rejected

    if Lp != L or hp != two_h:
        out = out[:, :L, :two_h]
    return out


# ----------------------------------------------------------------------------
# JAX glue: embedding + masked bidirectional LSTM (pack_padded emulation)
# ----------------------------------------------------------------------------
# TODO(synk): the external `embedding` module is not defined in the reference
# source; synthesized here as word-embedding + answer-tag-embedding lookup.
def embedding_forward(params, c_ids, c_mask, a_ids):
    emb = params["word_emb"][c_ids] + params["ans_emb"][a_ids]
    return emb * c_mask[..., None]


def _lstm_direction(x, mask, w_ih, w_hh, b_ih, b_hh, reverse):
    """Masked single-direction LSTM. x: (B, T, D), mask: (B, T) -> (B, T, H)."""
    B, T, _ = x.shape
    H = w_hh.shape[1]
    xs = jnp.transpose(x, (1, 0, 2))                 # (T, B, D)
    ms = jnp.transpose(mask, (1, 0))[..., None]      # (T, B, 1)

    def step(carry, inp):
        h, c = carry
        xt, mt = inp
        gates = xt @ w_ih.T + h @ w_hh.T + b_ih + b_hh
        i, f, g, o = jnp.split(gates, 4, axis=-1)
        i = jax.nn.sigmoid(i)
        f = jax.nn.sigmoid(f)
        g = jnp.tanh(g)
        o = jax.nn.sigmoid(o)
        c_new = f * c + i * g
        h_new = o * jnp.tanh(c_new)
        out = mt * h_new                              # padded steps output 0
        h = mt * h_new + (1.0 - mt) * h               # padded steps keep state
        c = mt * c_new + (1.0 - mt) * c
        return (h, c), out

    init = (jnp.zeros((B, H), jnp.float32), jnp.zeros((B, H), jnp.float32))
    _, ys = lax.scan(step, init, (xs, ms), reverse=reverse)
    return jnp.transpose(ys, (1, 0, 2))               # (B, T, H)


def bilstm_forward(params, x, mask, nlayers):
    h = x
    for layer in range(nlayers):
        p = params["lstm"][layer]
        fwd = _lstm_direction(h, mask, p["w_ih_f"], p["w_hh_f"],
                              p["b_ih_f"], p["b_hh_f"], reverse=False)
        bwd = _lstm_direction(h, mask, p["w_ih_b"], p["w_hh_b"],
                              p["b_ih_b"], p["b_hh_b"], reverse=True)
        h = jnp.concatenate([fwd, bwd], axis=-1)
    return h


def context_encoder_forward(params, c_ids, a_ids, nlayers):
    c_mask = jnp.sign(c_ids).astype(jnp.float32)          # return_mask_lengths
    c_emb = embedding_forward(params, c_ids, c_mask, a_ids)
    c_outputs = bilstm_forward(params, c_emb, c_mask, nlayers)
    # dropout=0.0 in the reference default -> identity, omitted.
    return ctx_attn_fuse(c_outputs, c_mask,
                         params["wc_t"], params["bc"],
                         params["wf_t"], params["wg_t"])


# ----------------------------------------------------------------------------
# Deterministic parameter construction
# ----------------------------------------------------------------------------
def make_params(key, vocab, ans_vocab, emsize, nhidden, nlayers):
    two_h = 2 * nhidden
    keys = jax.random.split(key, 8 + 8 * nlayers)
    k = iter(keys)
    params = {
        "word_emb": 0.1 * jax.random.normal(next(k), (vocab, emsize), jnp.float32),
        "ans_emb": 0.1 * jax.random.normal(next(k), (ans_vocab, emsize), jnp.float32),
        # Linear weights stored pre-transposed to (in, out) for the kernel.
        "wc_t": 0.1 * jax.random.normal(next(k), (two_h, two_h), jnp.float32),
        "bc": 0.1 * jax.random.normal(next(k), (two_h,), jnp.float32),
        "wf_t": 0.1 * jax.random.normal(next(k), (2 * two_h, two_h), jnp.float32),
        "wg_t": 0.1 * jax.random.normal(next(k), (2 * two_h, two_h), jnp.float32),
        "lstm": [],
    }
    scale = 1.0 / jnp.sqrt(jnp.float32(nhidden))
    in_dim = emsize
    for _ in range(nlayers):
        layer = {}
        for d in ("f", "b"):
            layer[f"w_ih_{d}"] = scale * jax.random.normal(
                next(k), (4 * nhidden, in_dim), jnp.float32)
            layer[f"w_hh_{d}"] = scale * jax.random.normal(
                next(k), (4 * nhidden, nhidden), jnp.float32)
            layer[f"b_ih_{d}"] = scale * jax.random.normal(
                next(k), (4 * nhidden,), jnp.float32)
            layer[f"b_hh_{d}"] = scale * jax.random.normal(
                next(k), (4 * nhidden,), jnp.float32)
        params["lstm"].append(layer)
        in_dim = 2 * nhidden
    return params


if __name__ == "__main__":
    # Small demo config: 2H = 128 (lane-aligned), L padded 8 -> 16 (sublanes),
    # 2 batch elements per grid step so the grid has length 2.
    B, L = 4, 8
    vocab, ans_vocab = 50, 3
    emsize, nhidden, nlayers = 32, 64, 1

    key = jax.random.PRNGKey(0)
    k_param, k_c, k_a = jax.random.split(key, 3)

    params = make_params(k_param, vocab, ans_vocab, emsize, nhidden, nlayers)

    # Token ids with trailing padding (zeros) as pack_padded_sequence expects.
    c_ids = jax.random.randint(k_c, (B, L), 1, vocab, dtype=jnp.int32)
    c_ids = c_ids.at[1, 5:].set(0)                     # example 1 has length 5
    c_ids = c_ids.at[3, 6:].set(0)                     # example 3 has length 6
    a_ids = jax.random.randint(k_a, (B, L), 0, ans_vocab, dtype=jnp.int32)
    a_ids = jnp.where(c_ids > 0, a_ids, 0)

    out = context_encoder_forward(params, c_ids, a_ids, nlayers)
    out = jax.block_until_ready(out)

    assert out.shape == (B, L, 2 * nhidden)
    assert bool(jnp.all(jnp.isfinite(out)))
    print("KERNEL_OK")
</pallas_src>

<mosaic_0001>
module attributes {stable_mosaic.version = 11 : i64} {
  func.func @_ctx_attn_fuse_kernel(%arg0: i32, %arg1: memref<2x16x128xbf16, #tpu.memory_space<vmem>>, %arg2: memref<2x16x1xf32, #tpu.memory_space<vmem>>, %arg3: memref<2x1x16xf32, #tpu.memory_space<vmem>>, %arg4: memref<128x384xbf16, #tpu.memory_space<vmem>>, %arg5: memref<1x1x128xf32, #tpu.memory_space<vmem>>, %arg6: memref<128x256xbf16, #tpu.memory_space<vmem>>, %arg7: memref<2x16x128xf32, #tpu.memory_space<vmem>>) attributes {dimension_semantics = [#tpu.dimension_semantics<parallel>], iteration_bounds = array<i64: 2>, scalar_prefetch = 0 : i64, scratch_operands = 0 : i64, tpu.core_type = #tpu.core_type<tc>, window_params = [{transform_indices = @transform_0, window_bounds = array<i64: 2, 16, 128>}, {transform_indices = @transform_1, window_bounds = array<i64: 2, 16, 1>}, {transform_indices = @transform_2, window_bounds = array<i64: 2, 1, 16>}, {pipeline_mode = #tpu.pipeline_mode<synchronous>, transform_indices = @transform_3, window_bounds = array<i64: 128, 384>}, {pipeline_mode = #tpu.pipeline_mode<synchronous>, transform_indices = @transform_4, window_bounds = array<i64: 1, 1, 128>}, {pipeline_mode = #tpu.pipeline_mode<synchronous>, transform_indices = @transform_5, window_bounds = array<i64: 128, 256>}, {transform_indices = @transform_6, window_bounds = array<i64: 2, 16, 128>}]} {
    %c0 = arith.constant 0 : index
    %c0_0 = arith.constant 0 : index
    %c0_1 = arith.constant 0 : index
    %0 = vector.load %arg1[%c0, %c0_0, %c0_1] : memref<2x16x128xbf16, #tpu.memory_space<vmem>>, vector<2x16x128xbf16>
    %1 = vector.shape_cast %0 : vector<2x16x128xbf16> to vector<32x128xbf16>
    %c0_2 = arith.constant 0 : index
    %c0_3 = arith.constant 0 : index
    %2 = vector.load %arg4[%c0_2, %c0_3] : memref<128x384xbf16, #tpu.memory_space<vmem>>, vector<128x384xbf16>
    %cst = arith.constant dense<0.000000e+00> : vector<32x384xf32>
    %3 = tpu.matmul %1, %2, %cst {dimension_numbers = #tpu.dot_dimension_numbers<[1], [0], [0], [1], [0, 0, 1, 1], [], []>} : vector<32x128xbf16>, vector<128x384xbf16>, vector<32x384xf32> -> vector<32x384xf32>
    %4 = vector.shape_cast %3 : vector<32x384xf32> to vector<2x16x384xf32>
    %5 = vector.extract_strided_slice %4 {offsets = [0, 0, 0], sizes = [2, 16, 128], strides = [1, 1, 1]} : vector<2x16x384xf32> to vector<2x16x128xf32>
    %c0_4 = arith.constant 0 : index
    %c0_5 = arith.constant 0 : index
    %c0_6 = arith.constant 0 : index
    %6 = vector.load %arg5[%c0_4, %c0_5, %c0_6] : memref<1x1x128xf32, #tpu.memory_space<vmem>>, vector<1x1x128xf32>
    %7 = vector.broadcast %6 : vector<1x1x128xf32> to vector<2x16x128xf32>
    %8 = arith.addf %5, %7 : vector<2x16x128xf32>
    %9 = vector.extract_strided_slice %4 {offsets = [0, 0, 128], sizes = [2, 16, 128], strides = [1, 1, 1]} : vector<2x16x384xf32> to vector<2x16x128xf32>
    %10 = arith.truncf %9 : vector<2x16x128xf32> to vector<2x16x128xbf16>
    %11 = vector.extract_strided_slice %4 {offsets = [0, 0, 256], sizes = [2, 16, 128], strides = [1, 1, 1]} : vector<2x16x384xf32> to vector<2x16x128xf32>
    %12 = arith.truncf %11 : vector<2x16x128xf32> to vector<2x16x128xbf16>
    %13 = arith.truncf %8 : vector<2x16x128xf32> to vector<2x16x128xbf16>
    "tpu.trace_start"() <{level = 10 : i32, message = "bqd,bkd->bqk"}> : () -> ()
    %cst_7 = arith.constant dense<0.000000e+00> : vector<2x16x16xf32>
    %14 = tpu.matmul %13, %0, %cst_7 {dimension_numbers = #tpu.dot_dimension_numbers<[2], [2], [1], [1], [0, 0, 0, 1, 1, 1], [0], [0]>} : vector<2x16x128xbf16>, vector<2x16x128xbf16>, vector<2x16x16xf32> -> vector<2x16x16xf32>
    "tpu.trace_stop"() : () -> ()
    %c0_8 = arith.constant 0 : index
    %c0_9 = arith.constant 0 : index
    %c0_10 = arith.constant 0 : index
    %15 = vector.load %arg2[%c0_8, %c0_9, %c0_10] : memref<2x16x1xf32, #tpu.memory_space<vmem>>, vector<2x16x1xf32>
    %c0_11 = arith.constant 0 : index
    %c0_12 = arith.constant 0 : index
    %c0_13 = arith.constant 0 : index
    %16 = vector.load %arg3[%c0_11, %c0_12, %c0_13] : memref<2x1x16xf32, #tpu.memory_space<vmem>>, vector<2x1x16xf32>
    %17 = vector.broadcast %15 : vector<2x16x1xf32> to vector<2x16x16xf32>
    %18 = vector.broadcast %16 : vector<2x1x16xf32> to vector<2x16x16xf32>
    %19 = arith.mulf %17, %18 : vector<2x16x16xf32>
    %20 = arith.addf %14, %19 : vector<2x16x16xf32>
    %21 = tpu.iota {dimensions = array<i32: 2>} : vector<1x1x16xi32>
    %c8_i32 = arith.constant 8 : i32
    %22 = vector.broadcast %c8_i32 : i32 to vector<1x1x16xi32>
    %23 = arith.cmpi slt, %21, %22 : vector<1x1x16xi32>
    %cst_14 = arith.constant -1.000000e+09 : f32
    %24 = vector.shape_cast %23 : vector<1x1x16xi1> to vector<1x1x16xi1>
    %25 = vector.broadcast %24 : vector<1x1x16xi1> to vector<2x16x16xi1>
    %26 = vector.broadcast %cst_14 : f32 to vector<2x16x16xf32>
    %27 = arith.select %25, %20, %26 : vector<2x16x16xi1>, vector<2x16x16xf32>
    %cst_15 = arith.constant dense<0xFF800000> : vector<2x16xf32>
    %28 = vector.multi_reduction <maximumf>, %27, %cst_15 [2] : vector<2x16x16xf32> to vector<2x16xf32>
    %29 = vector.shape_cast %28 : vector<2x16xf32> to vector<2x16x1xf32>
    %30 = vector.broadcast %29 : vector<2x16x1xf32> to vector<2x16x16xf32>
    %31 = arith.subf %27, %30 : vector<2x16x16xf32>
    %32 = math.exp %31 : vector<2x16x16xf32>
    %cst_16 = arith.constant dense<0.000000e+00> : vector<2x16xf32>
    %33 = vector.multi_reduction <add>, %32, %cst_16 [2] : vector<2x16x16xf32> to vector<2x16xf32>
    %34 = vector.shape_cast %33 : vector<2x16xf32> to vector<2x16x1xf32>
    %35 = tpu.reciprocal %34 {approx = true} : vector<2x16x1xf32> -> vector<2x16x1xf32>
    %36 = vector.broadcast %35 : vector<2x16x1xf32> to vector<2x16x16xf32>
    %37 = arith.mulf %32, %36 : vector<2x16x16xf32>
    %38 = arith.truncf %37 : vector<2x16x16xf32> to vector<2x16x16xbf16>
    "tpu.trace_start"() <{level = 10 : i32, message = "bqk,bkd->bqd"}> : () -> ()
    %cst_17 = arith.constant dense<0.000000e+00> : vector<2x16x128xf32>
    %39 = tpu.matmul %38, %0, %cst_17 {dimension_numbers = #tpu.dot_dimension_numbers<[2], [1], [1], [2], [0, 0, 0, 1, 1, 2], [0], [0]>} : vector<2x16x16xbf16>, vector<2x16x128xbf16>, vector<2x16x128xf32> -> vector<2x16x128xf32>
    "tpu.trace_stop"() : () -> ()
    %40 = arith.truncf %39 : vector<2x16x128xf32> to vector<2x16x128xbf16>
    %41 = vector.shape_cast %40 : vector<2x16x128xbf16> to vector<32x128xbf16>
    %c0_18 = arith.constant 0 : index
    %c0_19 = arith.constant 0 : index
    %42 = vector.load %arg6[%c0_18, %c0_19] : memref<128x256xbf16, #tpu.memory_space<vmem>>, vector<128x256xbf16>
    %cst_20 = arith.constant dense<0.000000e+00> : vector<32x256xf32>
    %43 = tpu.matmul %41, %42, %cst_20 {dimension_numbers = #tpu.dot_dimension_numbers<[1], [0], [0], [1], [0, 0, 1, 1], [], []>} : vector<32x128xbf16>, vector<128x256xbf16>, vector<32x256xf32> -> vector<32x256xf32>
    %44 = vector.shape_cast %43 : vector<32x256xf32> to vector<2x16x256xf32>
    %45 = vector.extract_strided_slice %44 {offsets = [0, 0, 0], sizes = [2, 16, 128], strides = [1, 1, 1]} : vector<2x16x256xf32> to vector<2x16x128xf32>
    %46 = vector.extract_strided_slice %44 {offsets = [0, 0, 128], sizes = [2, 16, 128], strides = [1, 1, 1]} : vector<2x16x256xf32> to vector<2x16x128xf32>
    %47 = arith.extf %10 : vector<2x16x128xbf16> to vector<2x16x128xf32>
    %48 = arith.addf %47, %45 : vector<2x16x128xf32>
    %49 = math.tanh %48 : vector<2x16x128xf32>
    %50 = arith.extf %12 : vector<2x16x128xbf16> to vector<2x16x128xf32>
    %51 = arith.addf %50, %46 : vector<2x16x128xf32>
    %52 = arith.negf %51 : vector<2x16x128xf32>
    %53 = math.exp %52 : vector<2x16x128xf32>
    %cst_21 = arith.constant 1.000000e+00 : f32
    %54 = vector.broadcast %cst_21 : f32 to vector<2x16x128xf32>
    %55 = arith.addf %54, %53 : vector<2x16x128xf32>
    %56 = arith.divf %54, %55 : vector<2x16x128xf32>
    %57 = arith.extf %0 : vector<2x16x128xbf16> to vector<2x16x128xf32>
    %58 = arith.subf %49, %57 : vector<2x16x128xf32>
    %59 = arith.mulf %56, %58 : vector<2x16x128xf32>
    %60 = arith.addf %57, %59 : vector<2x16x128xf32>
    %c0_22 = arith.constant 0 : index
    %c0_23 = arith.constant 0 : index
    %c0_24 = arith.constant 0 : index
    %61 = vector.load %arg7[%c0_22, %c0_23, %c0_24] : memref<2x16x128xf32, #tpu.memory_space<vmem>>, vector<2x16x128xf32>
    tpu.vector_store %arg7[%c0_22, %c0_23, %c0_24], %60 {strides = array<i32>} : memref<2x16x128xf32, #tpu.memory_space<vmem>>, vector<2x16x128xf32>,
    return
  }
  func.func @transform_0(%arg0: i32) -> (i32, i32, i32) {
    %c0_i32 = arith.constant 0 : i32
    %c0_i32_0 = arith.constant 0 : i32
    %c0_i32_1 = arith.constant 0 : i32
    return %arg0, %c0_i32, %c0_i32_0 : i32, i32, i32
  }
  func.func @transform_1(%arg0: i32) -> (i32, i32, i32) {
    %c0_i32 = arith.constant 0 : i32
    %c0_i32_0 = arith.constant 0 : i32
    %c0_i32_1 = arith.constant 0 : i32
    return %arg0, %c0_i32, %c0_i32_0 : i32, i32, i32
  }
  func.func @transform_2(%arg0: i32) -> (i32, i32, i32) {
    %c0_i32 = arith.constant 0 : i32
    %c0_i32_0 = arith.constant 0 : i32
    %c0_i32_1 = arith.constant 0 : i32
    return %arg0, %c0_i32, %c0_i32_0 : i32, i32, i32
  }
  func.func @transform_3(%arg0: i32) -> (i32, i32) {
    %c0_i32 = arith.constant 0 : i32
    %c0_i32_0 = arith.constant 0 : i32
    %c0_i32_1 = arith.constant 0 : i32
    return %c0_i32, %c0_i32_0 : i32, i32
  }
  func.func @transform_4(%arg0: i32) -> (i32, i32, i32) {
    %c0_i32 = arith.constant 0 : i32
    %c0_i32_0 = arith.constant 0 : i32
    %c0_i32_1 = arith.constant 0 : i32
    %c0_i32_2 = arith.constant 0 : i32
    return %c0_i32, %c0_i32_0, %c0_i32_1 : i32, i32, i32
  }
  func.func @transform_5(%arg0: i32) -> (i32, i32) {
    %c0_i32 = arith.constant 0 : i32
    %c0_i32_0 = arith.constant 0 : i32
    %c0_i32_1 = arith.constant 0 : i32
    return %c0_i32, %c0_i32_0 : i32, i32
  }
  func.func @transform_6(%arg0: i32) -> (i32, i32, i32) {
    %c0_i32 = arith.constant 0 : i32
    %c0_i32_0 = arith.constant 0 : i32
    %c0_i32_1 = arith.constant 0 : i32
    return %arg0, %c0_i32, %c0_i32_0 : i32, i32, i32
  }
}

module attributes {stable_mosaic.version = 11 : i64} {
  func.func @_ctx_attn_fuse_kernel(%arg0: i32, %arg1: memref<2x16x128xbf16, #tpu.memory_space<vmem>>, %arg2: memref<2x16x1xf32, #tpu.memory_space<vmem>>, %arg3: memref<2x1x16xf32, #tpu.memory_space<vmem>>, %arg4: memref<128x384xbf16, #tpu.memory_space<vmem>>, %arg5: memref<1x1x128xf32, #tpu.memory_space<vmem>>, %arg6: memref<128x256xbf16, #tpu.memory_space<vmem>>, %arg7: memref<2x16x128xf32, #tpu.memory_space<vmem>>) attributes {dimension_semantics = [#tpu.dimension_semantics<parallel>], iteration_bounds = array<i64: 2>, scalar_prefetch = 0 : i64, scratch_operands = 0 : i64, tpu.core_type = #tpu.core_type<tc>, window_params = [{transform_indices = @transform_0, window_bounds = array<i64: 2, 16, 128>}, {transform_indices = @transform_1, window_bounds = array<i64: 2, 16, 1>}, {transform_indices = @transform_2, window_bounds = array<i64: 2, 1, 16>}, {pipeline_mode = #tpu.pipeline_mode<synchronous>, transform_indices = @transform_3, window_bounds = array<i64: 128, 384>}, {pipeline_mode = #tpu.pipeline_mode<synchronous>, transform_indices = @transform_4, window_bounds = array<i64: 1, 1, 128>}, {pipeline_mode = #tpu.pipeline_mode<synchronous>, transform_indices = @transform_5, window_bounds = array<i64: 128, 256>}, {transform_indices = @transform_6, window_bounds = array<i64: 2, 16, 128>}]} {
    %c0 = arith.constant 0 : index
    %c0_0 = arith.constant 0 : index
    %c0_1 = arith.constant 0 : index
    %0 = vector.load %arg1[%c0, %c0_0, %c0_1] : memref<2x16x128xbf16, #tpu.memory_space<vmem>>, vector<2x16x128xbf16>
    %1 = vector.shape_cast %0 : vector<2x16x128xbf16> to vector<32x128xbf16>
    %c0_2 = arith.constant 0 : index
    %c0_3 = arith.constant 0 : index
    %2 = vector.load %arg4[%c0_2, %c0_3] : memref<128x384xbf16, #tpu.memory_space<vmem>>, vector<128x384xbf16>
    %cst = arith.constant dense<0.000000e+00> : vector<32x384xf32>
    %3 = tpu.matmul %1, %2, %cst {dimension_numbers = #tpu.dot_dimension_numbers<[1], [0], [0], [1], [0, 0, 1, 1], [], []>} : vector<32x128xbf16>, vector<128x384xbf16>, vector<32x384xf32> -> vector<32x384xf32>
    %4 = vector.shape_cast %3 : vector<32x384xf32> to vector<2x16x384xf32>
    %5 = vector.extract_strided_slice %4 {offsets = [0, 0, 0], sizes = [2, 16, 128], strides = [1, 1, 1]} : vector<2x16x384xf32> to vector<2x16x128xf32>
    %c0_4 = arith.constant 0 : index
    %c0_5 = arith.constant 0 : index
    %c0_6 = arith.constant 0 : index
    %6 = vector.load %arg5[%c0_4, %c0_5, %c0_6] : memref<1x1x128xf32, #tpu.memory_space<vmem>>, vector<1x1x128xf32>
    %7 = vector.broadcast %6 : vector<1x1x128xf32> to vector<2x16x128xf32>
    %8 = arith.addf %5, %7 : vector<2x16x128xf32>
    %9 = vector.extract_strided_slice %4 {offsets = [0, 0, 128], sizes = [2, 16, 128], strides = [1, 1, 1]} : vector<2x16x384xf32> to vector<2x16x128xf32>
    %10 = arith.truncf %9 : vector<2x16x128xf32> to vector<2x16x128xbf16>
    %11 = vector.extract_strided_slice %4 {offsets = [0, 0, 256], sizes = [2, 16, 128], strides = [1, 1, 1]} : vector<2x16x384xf32> to vector<2x16x128xf32>
    %12 = arith.truncf %11 : vector<2x16x128xf32> to vector<2x16x128xbf16>
    %13 = arith.truncf %8 : vector<2x16x128xf32> to vector<2x16x128xbf16>
    "tpu.trace_start"() <{level = 10 : i32, message = "bqd,bkd->bqk"}> : () -> ()
    %cst_7 = arith.constant dense<0.000000e+00> : vector<2x16x16xf32>
    %14 = tpu.matmul %13, %0, %cst_7 {dimension_numbers = #tpu.dot_dimension_numbers<[2], [2], [1], [1], [0, 0, 0, 1, 1, 1], [0], [0]>} : vector<2x16x128xbf16>, vector<2x16x128xbf16>, vector<2x16x16xf32> -> vector<2x16x16xf32>
    "tpu.trace_stop"() : () -> ()
    %c0_8 = arith.constant 0 : index
    %c0_9 = arith.constant 0 : index
    %c0_10 = arith.constant 0 : index
    %15 = vector.load %arg2[%c0_8, %c0_9, %c0_10] : memref<2x16x1xf32, #tpu.memory_space<vmem>>, vector<2x16x1xf32>
    %c0_11 = arith.constant 0 : index
    %c0_12 = arith.constant 0 : index
    %c0_13 = arith.constant 0 : index
    %16 = vector.load %arg3[%c0_11, %c0_12, %c0_13] : memref<2x1x16xf32, #tpu.memory_space<vmem>>, vector<2x1x16xf32>
    %17 = vector.broadcast %15 : vector<2x16x1xf32> to vector<2x16x16xf32>
    %18 = vector.broadcast %16 : vector<2x1x16xf32> to vector<2x16x16xf32>
    %19 = arith.mulf %17, %18 : vector<2x16x16xf32>
    %20 = arith.addf %14, %19 : vector<2x16x16xf32>
    %21 = tpu.iota {dimensions = array<i32: 2>} : vector<1x1x16xi32>
    %c8_i32 = arith.constant 8 : i32
    %22 = vector.broadcast %c8_i32 : i32 to vector<1x1x16xi32>
    %23 = arith.cmpi slt, %21, %22 : vector<1x1x16xi32>
    %cst_14 = arith.constant -1.000000e+09 : f32
    %24 = vector.shape_cast %23 : vector<1x1x16xi1> to vector<1x1x16xi1>
    %25 = vector.broadcast %24 : vector<1x1x16xi1> to vector<2x16x16xi1>
    %26 = vector.broadcast %cst_14 : f32 to vector<2x16x16xf32>
    %27 = arith.select %25, %20, %26 : vector<2x16x16xi1>, vector<2x16x16xf32>
    %cst_15 = arith.constant dense<0xFF800000> : vector<2x16xf32>
    %28 = vector.multi_reduction <maximumf>, %27, %cst_15 [2] : vector<2x16x16xf32> to vector<2x16xf32>
    %29 = vector.shape_cast %28 : vector<2x16xf32> to vector<2x16x1xf32>
    %30 = vector.broadcast %29 : vector<2x16x1xf32> to vector<2x16x16xf32>
    %31 = arith.subf %27, %30 : vector<2x16x16xf32>
    %32 = math.exp %31 : vector<2x16x16xf32>
    %cst_16 = arith.constant dense<0.000000e+00> : vector<2x16xf32>
    %33 = vector.multi_reduction <add>, %32, %cst_16 [2] : vector<2x16x16xf32> to vector<2x16xf32>
    %34 = vector.shape_cast %33 : vector<2x16xf32> to vector<2x16x1xf32>
    %35 = tpu.reciprocal %34 {approx = true} : vector<2x16x1xf32> -> vector<2x16x1xf32>
    %36 = vector.broadcast %35 : vector<2x16x1xf32> to vector<2x16x16xf32>
    %37 = arith.mulf %32, %36 : vector<2x16x16xf32>
    %38 = arith.truncf %37 : vector<2x16x16xf32> to vector<2x16x16xbf16>
    "tpu.trace_start"() <{level = 10 : i32, message = "bqk,bkd->bqd"}> : () -> ()
    %cst_17 = arith.constant dense<0.000000e+00> : vector<2x16x128xf32>
    %39 = tpu.matmul %38, %0, %cst_17 {dimension_numbers = #tpu.dot_dimension_numbers<[2], [1], [1], [2], [0, 0, 0, 1, 1, 2], [0], [0]>} : vector<2x16x16xbf16>, vector<2x16x128xbf16>, vector<2x16x128xf32> -> vector<2x16x128xf32>
    "tpu.trace_stop"() : () -> ()
    %40 = arith.truncf %39 : vector<2x16x128xf32> to vector<2x16x128xbf16>
    %41 = vector.shape_cast %40 : vector<2x16x128xbf16> to vector<32x128xbf16>
    %c0_18 = arith.constant 0 : index
    %c0_19 = arith.constant 0 : index
    %42 = vector.load %arg6[%c0_18, %c0_19] : memref<128x256xbf16, #tpu.memory_space<vmem>>, vector<128x256xbf16>
    %cst_20 = arith.constant dense<0.000000e+00> : vector<32x256xf32>
    %43 = tpu.matmul %41, %42, %cst_20 {dimension_numbers = #tpu.dot_dimension_numbers<[1], [0], [0], [1], [0, 0, 1, 1], [], []>} : vector<32x128xbf16>, vector<128x256xbf16>, vector<32x256xf32> -> vector<32x256xf32>
    %44 = vector.shape_cast %43 : vector<32x256xf32> to vector<2x16x256xf32>
    %45 = vector.extract_strided_slice %44 {offsets = [0, 0, 0], sizes = [2, 16, 128], strides = [1, 1, 1]} : vector<2x16x256xf32> to vector<2x16x128xf32>
    %46 = vector.extract_strided_slice %44 {offsets = [0, 0, 128], sizes = [2, 16, 128], strides = [1, 1, 1]} : vector<2x16x256xf32> to vector<2x16x128xf32>
    %47 = arith.extf %10 : vector<2x16x128xbf16> to vector<2x16x128xf32>
    %48 = arith.addf %47, %45 : vector<2x16x128xf32>
    %49 = math.tanh %48 : vector<2x16x128xf32>
    %50 = arith.extf %12 : vector<2x16x128xbf16> to vector<2x16x128xf32>
    %51 = arith.addf %50, %46 : vector<2x16x128xf32>
    %52 = arith.negf %51 : vector<2x16x128xf32>
    %53 = math.exp %52 : vector<2x16x128xf32>
    %cst_21 = arith.constant 1.000000e+00 : f32
    %54 = vector.broadcast %cst_21 : f32 to vector<2x16x128xf32>
    %55 = arith.addf %54, %53 : vector<2x16x128xf32>
    %56 = arith.divf %54, %55 : vector<2x16x128xf32>
    %57 = arith.extf %0 : vector<2x16x128xbf16> to vector<2x16x128xf32>
    %58 = arith.subf %49, %57 : vector<2x16x128xf32>
    %59 = arith.mulf %56, %58 : vector<2x16x128xf32>
    %60 = arith.addf %57, %59 : vector<2x16x128xf32>
    %c0_22 = arith.constant 0 : index
    %c0_23 = arith.constant 0 : index
    %c0_24 = arith.constant 0 : index
    %61 = vector.load %arg7[%c0_22, %c0_23, %c0_24] : memref<2x16x128xf32, #tpu.memory_space<vmem>>, vector<2x16x128xf32>
    tpu.vector_store %arg7[%c0_22, %c0_23, %c0_24], %60 {strides = array<i32>} : memref<2x16x128xf32, #tpu.memory_space<vmem>>, vector<2x16x128xf32>,
    return
  }
  func.func @transform_0(%arg0: i32) -> (i32, i32, i32) {
    %c0_i32 = arith.constant 0 : i32
    %c0_i32_0 = arith.constant 0 : i32
    %c0_i32_1 = arith.constant 0 : i32
    return %arg0, %c0_i32, %c0_i32_0 : i32, i32, i32
  }
  func.func @transform_1(%arg0: i32) -> (i32, i32, i32) {
    %c0_i32 = arith.constant 0 : i32
    %c0_i32_0 = arith.constant 0 : i32
    %c0_i32_1 = arith.constant 0 : i32
    return %arg0, %c0_i32, %c0_i32_0 : i32, i32, i32
  }
  func.func @transform_2(%arg0: i32) -> (i32, i32, i32) {
    %c0_i32 = arith.constant 0 : i32
    %c0_i32_0 = arith.constant 0 : i32
    %c0_i32_1 = arith.constant 0 : i32
    return %arg0, %c0_i32, %c0_i32_0 : i32, i32, i32
  }
  func.func @transform_3(%arg0: i32) -> (i32, i32) {
    %c0_i32 = arith.constant 0 : i32
    %c0_i32_0 = arith.constant 0 : i32
    %c0_i32_1 = arith.constant 0 : i32
    return %c0_i32, %c0_i32_0 : i32, i32
  }
  func.func @transform_4(%arg0: i32) -> (i32, i32, i32) {
    %c0_i32 = arith.constant 0 : i32
    %c0_i32_0 = arith.constant 0 : i32
    %c0_i32_1 = arith.constant 0 : i32
    %c0_i32_2 = arith.constant 0 : i32
    return %c0_i32, %c0_i32_0, %c0_i32_1 : i32, i32, i32
  }
  func.func @transform_5(%arg0: i32) -> (i32, i32) {
    %c0_i32 = arith.constant 0 : i32
    %c0_i32_0 = arith.constant 0 : i32
    %c0_i32_1 = arith.constant 0 : i32
    return %c0_i32, %c0_i32_0 : i32, i32
  }
  func.func @transform_6(%arg0: i32) -> (i32, i32, i32) {
    %c0_i32 = arith.constant 0 : i32
    %c0_i32_0 = arith.constant 0 : i32
    %c0_i32_1 = arith.constant 0 : i32
    return %arg0, %c0_i32, %c0_i32_0 : i32, i32, i32
  }
}

</mosaic_0001>

<llo_original>
// kernel: tpu_custom_call.1
$region0: #{tpu_custom_call.1}
  #allocation0 [shape = 'u32[]', space=smem, size = 0x4, offset = 0x4, fixed_abs, tag = 'smem constant byte address 0x4 - core index']
  #allocation1 [shape = 'u32[72,128]{1,0:T(1,128)}', space=vmem, size = 0x9000, scoped, tag = 'internal scratch']
  %s0 = inlined_call_operand.vmem [shape: bf16[4,16,128], index: 0, kind: input, shape index: {}]
  %s1 = inlined_call_operand.vmem [shape: f32[4,16,1], index: 1, kind: input, shape index: {}]
  %s2 = inlined_call_operand.vmem [shape: f32[4,1,16], index: 2, kind: input, shape index: {}]
  %s3 = inlined_call_operand.hbm [shape: bf16[128,384], index: 3, kind: input, shape index: {}]
  %s4 = inlined_call_operand.vmem [shape: f32[1,1,128], index: 4, kind: input, shape index: {}]
  %s5 = inlined_call_operand.hbm [shape: bf16[128,256], index: 5, kind: input, shape index: {}]
  %s6 = inlined_call_operand.hbm [shape: f32[4,16,128], index: 6, kind: output, shape index: {}]
  %s7 = sld [smem:[#allocation0]]
  $region65: #{tpu_custom_call.1} parent=0
    _
  %s9 = ssub.s32 1, %s7
  %s10 = scalar_select 0, %s9, %s7
  $region1: #{tpu_custom_call.1} parent=0
    #allocation2 [shape = 'u8[98304]{0}', space=vmem, size = 0x18000, scoped, tag = 'input window, operand 3, single buffered']
    #allocation3 [shape = 's32[2]{0}', space=sflag, size = 0x8, scoped, tag = 'scoped memory for tpu_custom_call.1']
    #allocation4 [shape = 's32[2]{0}', space=sflag, size = 0x8, scoped, tag = 'scoped memory for tpu_custom_call.1']
    #allocation5 [shape = 'u8[65536]{0}', space=vmem, size = 0x10000, scoped, tag = 'input window, operand 5, single buffered']
    #allocation6 [shape = 's32[1]{0}', space=sflag, size = 0x4, scoped, tag = 'scoped memory for tpu_custom_call.1']
    #allocation7 [shape = 'u8[32768]{0}', space=vmem, size = 0x8000, scoped, tag = 'output window, operand 0']
    %11 = vsyncpa [#allocation3], 0
    %12 = vsyncpa [#allocation6], 0
    %13 = vsyncpa [#allocation4], 0
    %s14 = scalar_lea.sflag [#allocation4], 1
    %15 = vsyncpa %s14, 0
    loop: start=0, step=1, limit=4
    $region2: #{tpu_custom_call.1} parent=1 // loop_pre_header
      _
    $region3: #{tpu_custom_call.1} parent=1 // loop_header
      %s17 = sphi 0, %s21
      %p18 = scmp.ge.s32.totalorder %s17, 4
      %s27 = sphi 0, %s29
      %s30 = sphi 0, %s27
      %s31 = sphi 0, %s30
      %s47 = sphi 0, %s31
      %s53 = sphi 0, %s55
      %s56 = sphi 0, %s53
      %s57 = sphi 0, %s56
      %s73 = sphi 0, %s57
      %s79 = sphi 0, %s81
      %s82 = sphi 0, %s79
      %s83 = sphi 0, %s82
      %s99 = sphi 0, %s83
      %s103 = sphi 0, %s103
      %s105 = sphi 0, %s103
      %s106 = sphi 0, %s105
      %s120 = sphi 0, %s106
      %s124 = sphi 0, %s124
      %s126 = sphi 0, %s124
      %s127 = sphi 0, %s126
      %s141 = sphi 0, %s127
      %s145 = sphi 0, %s145
      %s147 = sphi 0, %s145
      %s148 = sphi 0, %s147
      %s162 = sphi 0, %s148
      %s168 = sphi 0, %s170
      %s171 = sphi 0, %s168
      %s172 = sphi 0, %s171
      %s188 = sphi 0, %s172
    $region4: #{tpu_custom_call.1} parent=1 // loop_header_branch
      %20 = sbr.rel (%p18) target = $region8
    $region5: #{tpu_custom_call.1} parent=1 // loop_body
      %s22 = ssub.s32 %s17, 1
      %s23 = ssub.s32 %s17, 2
      %s24 = sadd.s32 %s17, 1
      %s25 = ssub.s32 %s17, %s24
      %p26 = scmp.eq.s32.totalorder %s25, 0
      %s28 = sadd.s32 %s27, 1
      %s29 = scalar_select %p26, %s27, %s28
      %p32 = pneg %p26
      %p33 = scmp.eq.s32.totalorder %s17, 1
      %p34 = por %p32, %p33
      %p35 = scmp.ne.s32.totalorder %s27, %s30
      %p36 = scmp.eq.s32.totalorder %s17, 0
      %p37 = por %p35, %p36
      %p38 = scmp.ne.s32.totalorder %s27, %s30
      %p39 = scmp.eq.s32.totalorder %s22, 1
      %p40 = por %p38, %p39
      %p41 = scmp.ne.s32.totalorder %s30, %s31
      %p42 = scmp.eq.s32.totalorder %s22, 0
      %p43 = por %p41, %p42
      %p44 = scmp.ne.s32.totalorder %s30, %s31
      %p45 = scmp.eq.s32.totalorder %s23, 1
      %p46 = por %p44, %p45
      %p48 = scmp.ne.s32.totalorder %s31, %s47
      %p49 = scmp.eq.s32.totalorder %s23, 0
      %p50 = por %p48, %p49
      %s51 = ssub.s32 %s17, %s24
      %p52 = scmp.eq.s32.totalorder %s51, 0
      %s54 = sadd.s32 %s53, 1
      %s55 = scalar_select %p52, %s53, %s54
      %p58 = pneg %p52
      %p59 = scmp.eq.s32.totalorder %s17, 1
      %p60 = por %p58, %p59
      %p61 = scmp.ne.s32.totalorder %s53, %s56
      %p62 = scmp.eq.s32.totalorder %s17, 0
      %p63 = por %p61, %p62
      %p64 = scmp.ne.s32.totalorder %s53, %s56
      %p65 = scmp.eq.s32.totalorder %s22, 1
      %p66 = por %p64, %p65
      %p67 = scmp.ne.s32.totalorder %s56, %s57
      %p68 = scmp.eq.s32.totalorder %s22, 0
      %p69 = por %p67, %p68
      %p70 = scmp.ne.s32.totalorder %s56, %s57
      %p71 = scmp.eq.s32.totalorder %s23, 1
      %p72 = por %p70, %p71
      %p74 = scmp.ne.s32.totalorder %s57, %s73
      %p75 = scmp.eq.s32.totalorder %s23, 0
      %p76 = por %p74, %p75
      %s77 = ssub.s32 %s17, %s24
      %p78 = scmp.eq.s32.totalorder %s77, 0
      %s80 = sadd.s32 %s79, 1
      %s81 = scalar_select %p78, %s79, %s80
      %p84 = pneg %p78
      %p85 = scmp.eq.s32.totalorder %s17, 1
      %p86 = por %p84, %p85
      %p87 = scmp.ne.s32.totalorder %s79, %s82
      %p88 = scmp.eq.s32.totalorder %s17, 0
      %p89 = por %p87, %p88
      %p90 = scmp.ne.s32.totalorder %s79, %s82
      %p91 = scmp.eq.s32.totalorder %s22, 1
      %p92 = por %p90, %p91
      %p93 = scmp.ne.s32.totalorder %s82, %s83
      %p94 = scmp.eq.s32.totalorder %s22, 0
      %p95 = por %p93, %p94
      %p96 = scmp.ne.s32.totalorder %s82, %s83
      %p97 = scmp.eq.s32.totalorder %s23, 1
      %p98 = por %p96, %p97
      %p100 = scmp.ne.s32.totalorder %s83, %s99
      %p101 = scmp.eq.s32.totalorder %s23, 0
      %p102 = por %p100, %p101
      %s104 = sadd.s32 %s103, 1
      %p107 = scmp.eq.s32.totalorder %s17, 1
      %p108 = scmp.ne.s32.totalorder %s103, %s105
      %p109 = scmp.eq.s32.totalorder %s17, 0
      %p110 = por %p108, %p109
      %p111 = scmp.ne.s32.totalorder %s103, %s105
      %p112 = scmp.eq.s32.totalorder %s22, 1
      %p113 = por %p111, %p112
      %p114 = scmp.ne.s32.totalorder %s105, %s106
      %p115 = scmp.eq.s32.totalorder %s22, 0
      %p116 = por %p114, %p115
      %p117 = scmp.ne.s32.totalorder %s105, %s106
      %p118 = scmp.eq.s32.totalorder %s23, 1
      %p119 = por %p117, %p118
      %p121 = scmp.ne.s32.totalorder %s106, %s120
      %p122 = scmp.eq.s32.totalorder %s23, 0
      %p123 = por %p121, %p122
      %s125 = sadd.s32 %s124, 1
      %p128 = scmp.eq.s32.totalorder %s17, 1
      %p129 = scmp.ne.s32.totalorder %s124, %s126
      %p130 = scmp.eq.s32.totalorder %s17, 0
      %p131 = por %p129, %p130
      %p132 = scmp.ne.s32.totalorder %s124, %s126
      %p133 = scmp.eq.s32.totalorder %s22, 1
      %p134 = por %p132, %p133
      %p135 = scmp.ne.s32.totalorder %s126, %s127
      %p136 = scmp.eq.s32.totalorder %s22, 0
      %p137 = por %p135, %p136
      %p138 = scmp.ne.s32.totalorder %s126, %s127
      %p139 = scmp.eq.s32.totalorder %s23, 1
      %p140 = por %p138, %p139
      %p142 = scmp.ne.s32.totalorder %s127, %s141
      %p143 = scmp.eq.s32.totalorder %s23, 0
      %p144 = por %p142, %p143
      %s146 = sadd.s32 %s145, 1
      %p149 = scmp.eq.s32.totalorder %s17, 1
      %p150 = scmp.ne.s32.totalorder %s145, %s147
      %p151 = scmp.eq.s32.totalorder %s17, 0
      %p152 = por %p150, %p151
      %p153 = scmp.ne.s32.totalorder %s145, %s147
      %p154 = scmp.eq.s32.totalorder %s22, 1
      %p155 = por %p153, %p154
      %p156 = scmp.ne.s32.totalorder %s147, %s148
      %p157 = scmp.eq.s32.totalorder %s22, 0
      %p158 = por %p156, %p157
      %p159 = scmp.ne.s32.totalorder %s147, %s148
      %p160 = scmp.eq.s32.totalorder %s23, 1
      %p161 = por %p159, %p160
      %p163 = scmp.ne.s32.totalorder %s148, %s162
      %p164 = scmp.eq.s32.totalorder %s23, 0
      %p165 = por %p163, %p164
      %s166 = ssub.s32 %s17, %s24
      %p167 = scmp.eq.s32.totalorder %s166, 0
      %s169 = sadd.s32 %s168, 1
      %s170 = scalar_select %p167, %s168, %s169
      %p173 = pneg %p167
      %p174 = scmp.eq.s32.totalorder %s17, 1
      %p175 = por %p173, %p174
      %p176 = scmp.ne.s32.totalorder %s168, %s171
      %p177 = scmp.eq.s32.totalorder %s17, 0
      %p178 = por %p176, %p177
      %p179 = scmp.ne.s32.totalorder %s168, %s171
      %p180 = scmp.eq.s32.totalorder %s22, 1
      %p181 = por %p179, %p180
      %p182 = scmp.ne.s32.totalorder %s171, %s172
      %p183 = scmp.eq.s32.totalorder %s22, 0
      %p184 = por %p182, %p183
      %p185 = scmp.ne.s32.totalorder %s171, %s172
      %p186 = scmp.eq.s32.totalorder %s23, 1
      %p187 = por %p185, %p186
      %p189 = scmp.ne.s32.totalorder %s172, %s188
      %p190 = scmp.eq.s32.totalorder %s23, 0
      %p191 = por %p189, %p190
      %p192 = scmp.le.s32.totalorder 1, %s17
      %p193 = scmp.lt.s32.totalorder %s17, 3
      %p194 = pnand %p192, %p193
      %p195 = pneg %p194
      // Predicated region
      $region9: #{tpu_custom_call.1} parent=5 // pred_check
        _
      $region10: #{tpu_custom_call.1} parent=5 // pred_check_branch
        %197 = sbr.rel (%p194) target = $region12
      $region11: #{tpu_custom_call.1} parent=5 // pred_region
        %s198 = ssub.s32 %s17, 1
        // Predicated region
        $region13: #{tpu_custom_call.1} parent=11 // pred_check
          %p199 = pneg %p116
        $region14: #{tpu_custom_call.1} parent=11 // pred_check_branch
          %201 = sbr.rel (%p199) target = $region16
        $region15: #{tpu_custom_call.1} parent=11 // pred_region
          %203 = vsyncadd [#allocation3], 0
          %s204 = sshll.u32 %s3, 4
          %s205 = int_to_ptr.hbm [resolvable:$true] %s204
          %s206 = sshll.u32 [#allocation2], 4
          %s207 = int_to_ptr.vmem [resolvable:$true] %s206
          %212 = dma.hbm_to_vmem [thread:$0]  %s205, 3072, %s207, [#allocation3], 192, 192, 12
        $region16: #{tpu_custom_call.1} parent=11 // pred_fallthru
          _
        // Predicated region
        $region17: #{tpu_custom_call.1} parent=11 // pred_check
          %p213 = pneg %p137
        $region18: #{tpu_custom_call.1} parent=11 // pred_check_branch
          %215 = sbr.rel (%p213) target = $region20
        $region19: #{tpu_custom_call.1} parent=11 // pred_region
          _
        $region20: #{tpu_custom_call.1} parent=11 // pred_fallthru
          _
        // Predicated region
        $region21: #{tpu_custom_call.1} parent=11 // pred_check
          %p216 = pneg %p158
        $region22: #{tpu_custom_call.1} parent=11 // pred_check_branch
          %218 = sbr.rel (%p216) target = $region24
        $region23: #{tpu_custom_call.1} parent=11 // pred_region
          %220 = vsyncadd [#allocation6], 0
          %s221 = sshll.u32 %s5, 4
          %s222 = int_to_ptr.hbm [resolvable:$true] %s221
          %s223 = sshll.u32 [#allocation5], 4
          %s224 = int_to_ptr.vmem [resolvable:$true] %s223
          %229 = dma.hbm_to_vmem [thread:$0]  %s222, 2048, %s224, [#allocation6], 128, 128, 8
        $region24: #{tpu_custom_call.1} parent=11 // pred_fallthru
          _
      $region12: #{tpu_custom_call.1} parent=5 // pred_fallthru
        _
      %p230 = scmp.lt.s32.totalorder %s17, 2
      // Predicated region
      $region25: #{tpu_custom_call.1} parent=5 // pred_check
        %p231 = pneg %p230
      $region26: #{tpu_custom_call.1} parent=5 // pred_check_branch
        %233 = sbr.rel (%p231) target = $region28
      $region27: #{tpu_custom_call.1} parent=5 // pred_region
        // Predicated region
        $region29: #{tpu_custom_call.1} parent=27 // pred_check
          %p234 = pneg %p37
        $region30: #{tpu_custom_call.1} parent=27 // pred_check_branch
          %236 = sbr.rel (%p234) target = $region32
        $region31: #{tpu_custom_call.1} parent=27 // pred_region
          %s237 = smul.u32 2, %s17
          %p238 = scmp.lt.s32.totalorder %s237, 3
          %s239 = scalar_select %p238, %s237, 3
          %s240 = smul.addr %s239, 2
          %s241 = smul.addr %s240, 4
          %s242 = scalar_lea.vmem %s0, %s241
          %s243 = smul.u32 2, %s17
        $region32: #{tpu_custom_call.1} parent=27 // pred_fallthru
          _
        // Predicated region
        $region33: #{tpu_custom_call.1} parent=27 // pred_check
          %p244 = pneg %p63
        $region34: #{tpu_custom_call.1} parent=27 // pred_check_branch
          %246 = sbr.rel (%p244) target = $region36
        $region35: #{tpu_custom_call.1} parent=27 // pred_region
          %s247 = smul.u32 2, %s17
          %p248 = scmp.lt.s32.totalorder %s247, 3
          %s249 = scalar_select %p248, %s247, 3
          %s250 = smul.addr %s249, 2
          %s251 = smul.addr %s250, 8
          %s252 = scalar_lea.vmem %s1, %s251
          %s253 = smul.u32 2, %s17
        $region36: #{tpu_custom_call.1} parent=27 // pred_fallthru
          _
        // Predicated region
        $region37: #{tpu_custom_call.1} parent=27 // pred_check
          %p254 = pneg %p89
        $region38: #{tpu_custom_call.1} parent=27 // pred_check_branch
          %256 = sbr.rel (%p254) target = $region40
        $region39: #{tpu_custom_call.1} parent=27 // pred_region
          %s257 = smul.u32 2, %s17
          %p258 = scmp.lt.s32.totalorder %s257, 3
          %s259 = scalar_select %p258, %s257, 3
          %s260 = scalar_lea.vmem %s2, %s259
          %s261 = smul.u32 2, %s17
        $region40: #{tpu_custom_call.1} parent=27 // pred_fallthru
          _
      $region28: #{tpu_custom_call.1} parent=5 // pred_fallthru
        _
      %p262 = scmp.le.s32.totalorder 1, %s17
      %p263 = scmp.lt.s32.totalorder %s17, 3
      %p264 = pnand %p262, %p263
      %p265 = pneg %p264
      // Predicated region
      $region41: #{tpu_custom_call.1} parent=5 // pred_check
        _
      $region42: #{tpu_custom_call.1} parent=5 // pred_check_branch
        %267 = sbr.rel (%p264) target = $region44
      $region43: #{tpu_custom_call.1} parent=5 // pred_region
        %s268 = ssub.s32 %s17, 1
        // Predicated region
        $region45: #{tpu_custom_call.1} parent=43 // pred_check
          %p269 = pneg %p116
        $region46: #{tpu_custom_call.1} parent=43 // pred_check_branch
          %271 = sbr.rel (%p269) target = $region48
        $region47: #{tpu_custom_call.1} parent=43 // pred_region
          %273 = dma.done [#allocation3], 3072
        $region48: #{tpu_custom_call.1} parent=43 // pred_fallthru
          _
        // Predicated region
        $region49: #{tpu_custom_call.1} parent=43 // pred_check
          %p274 = pneg %p158
        $region50: #{tpu_custom_call.1} parent=43 // pred_check_branch
          %276 = sbr.rel (%p274) target = $region52
        $region51: #{tpu_custom_call.1} parent=43 // pred_region
          %278 = dma.done [#allocation6], 2048
        $region52: #{tpu_custom_call.1} parent=43 // pred_fallthru
          _
        %s279 = smul.u32 2, %s22
        %p280 = scmp.lt.s32.totalorder %s279, 3
        %s281 = scalar_select %p280, %s279, 3
        %s282 = smul.addr %s281, 2
        %s283 = smul.addr %s282, 4
        %s284 = scalar_lea.vmem %s0, %s283
        %p285 = pneg %p43
        %p286 = pneg %p40
        %s287 = smul.u32 2, %s22
        %p288 = scmp.lt.s32.totalorder %s287, 3
        %s289 = scalar_select %p288, %s287, 3
        %s290 = smul.addr %s289, 2
        %s291 = smul.addr %s290, 8
        %s292 = scalar_lea.vmem %s1, %s291
        %p293 = pneg %p69
        %p294 = pneg %p66
        %s295 = smul.u32 2, %s22
        %p296 = scmp.lt.s32.totalorder %s295, 3
        %s297 = scalar_select %p296, %s295, 3
        %s298 = scalar_lea.vmem %s2, %s297
        %p299 = pneg %p95
        %p300 = pneg %p92
        %p301 = pneg %p116
        %p302 = pneg %p113
        %p303 = pneg %p137
        %p304 = pneg %p134
        %p305 = pneg %p158
        %p306 = pneg %p155
        %p307 = pneg %p184
        %p308 = pneg %p181
        %s309 = sand.u32 %s171, 1
        %s310 = scalar_lea.sflag [#allocation4], %s309
        %s311 = sand.u32 %s171, 1
        %s312 = smul.addr %s311, 32
        %s313 = scalar_lea.vmem [#allocation7], %s312
        %s314 = smul.u32 2, %s22
        %p315 = scmp.lt.s32.totalorder %s314, 3
        %s316 = scalar_select %p315, %s314, 3
        %s317 = smul.addr %s316, 2
        %s318 = smul.addr %s317, 4
        %s319 = scalar_lea.vmem %s0, %s318
        %s320 = smul.u32 2, %s22
        %s321 = smul.u32 2, %s22
        %p322 = scmp.lt.s32.totalorder %s321, 3
        %s323 = scalar_select %p322, %s321, 3
        %s324 = smul.addr %s323, 2
        %s325 = smul.addr %s324, 8
        %s326 = scalar_lea.vmem %s1, %s325
        %s327 = smul.u32 2, %s22
        %s328 = smul.u32 2, %s22
        %p329 = scmp.lt.s32.totalorder %s328, 3
        %s330 = scalar_select %p329, %s328, 3
        %s331 = scalar_lea.vmem %s2, %s330
        %s332 = smul.u32 2, %s22
        %s333 = smul.u32 2, %s22
        %v335 = vld [vmem:[%s319] sm:$0xf]
        %v336 = vld [vmem:[%s319 + $0x4] sm:$0xf]
        %v337 = vld [vmem:[%s319 + $0x8] sm:$0xf]
        %v338 = vld [vmem:[%s319 + $0xc] sm:$0xf]
        %v339 = vld [vmem:[#allocation2] sm:$0xff]
        %v340 = vld [vmem:[#allocation2 + $0x8] sm:$0xf]
        %v341 = vld [vmem:[#allocation2 + $0xc] sm:$0xff]
        %v342 = vld [vmem:[#allocation2 + $0x14] sm:$0xf]
        %v343 = vld [vmem:[#allocation2 + $0x18] sm:$0xff]
        %v344 = vld [vmem:[#allocation2 + $0x20] sm:$0xf]
        %v345 = vld [vmem:[#allocation2 + $0x24] sm:$0xff]
        %v346 = vld [vmem:[#allocation2 + $0x2c] sm:$0xf]
        %v347 = vld [vmem:[#allocation2 + $0x30] sm:$0xff]
        %v348 = vld [vmem:[#allocation2 + $0x38] sm:$0xf]
        %v349 = vld [vmem:[#allocation2 + $0x3c] sm:$0xff]
        %v350 = vld [vmem:[#allocation2 + $0x44] sm:$0xf]
        %v351 = vld [vmem:[#allocation2 + $0x48] sm:$0xff]
        %v352 = vld [vmem:[#allocation2 + $0x50] sm:$0xf]
        %v353 = vld [vmem:[#allocation2 + $0x54] sm:$0xff]
        %v354 = vld [vmem:[#allocation2 + $0x5c] sm:$0xf]
        %v355 = vld [vmem:[#allocation2 + $0x60] sm:$0xff]
        %v356 = vld [vmem:[#allocation2 + $0x68] sm:$0xf]
        %v357 = vld [vmem:[#allocation2 + $0x6c] sm:$0xff]
        %v358 = vld [vmem:[#allocation2 + $0x74] sm:$0xf]
        %v359 = vld [vmem:[#allocation2 + $0x78] sm:$0xff]
        %v360 = vld [vmem:[#allocation2 + $0x80] sm:$0xf]
        %v361 = vld [vmem:[#allocation2 + $0x84] sm:$0xff]
        %v362 = vld [vmem:[#allocation2 + $0x8c] sm:$0xf]
        %v363 = vld [vmem:[#allocation2 + $0x90] sm:$0xff]
        %v364 = vld [vmem:[#allocation2 + $0x98] sm:$0xf]
        %v365 = vld [vmem:[#allocation2 + $0x9c] sm:$0xff]
        %v366 = vld [vmem:[#allocation2 + $0xa4] sm:$0xf]
        %v367 = vld [vmem:[#allocation2 + $0xa8] sm:$0xff]
        %v368 = vld [vmem:[#allocation2 + $0xb0] sm:$0xf]
        %v369 = vld [vmem:[#allocation2 + $0xb4] sm:$0xff]
        %v370 = vld [vmem:[#allocation2 + $0xbc] sm:$0xf]
        %v375 = vunpack.c.l.b16 %v335
        %v376 = vunpack.c.l.b16 %v336
        %v377 = vunpack.c.l.b16 %v337
        %v378 = vunpack.c.l.b16 %v338
        %v379 = vpack.c.b16 %v376, %v375
        %v380 = vpack.c.b16 %v378, %v377
        %v415 = vunpack.c.l.b16 %v339
        %v416 = vunpack.c.h.b16 %v339
        %v417 = vunpack.c.l.b16 %v340
        %v418 = vunpack.c.l.b16 %v341
        %v419 = vunpack.c.h.b16 %v341
        %v420 = vunpack.c.l.b16 %v342
        %v421 = vunpack.c.l.b16 %v343
        %v422 = vunpack.c.h.b16 %v343
        %v423 = vunpack.c.l.b16 %v344
        %v424 = vunpack.c.l.b16 %v345
        %v425 = vunpack.c.h.b16 %v345
        %v426 = vunpack.c.l.b16 %v346
        %v427 = vunpack.c.l.b16 %v347
        %v428 = vunpack.c.h.b16 %v347
        %v429 = vunpack.c.l.b16 %v348
        %v430 = vunpack.c.l.b16 %v349
        %v431 = vunpack.c.h.b16 %v349
        %v432 = vunpack.c.l.b16 %v350
        %v433 = vunpack.c.l.b16 %v351
        %v434 = vunpack.c.h.b16 %v351
        %v435 = vunpack.c.l.b16 %v352
        %v436 = vunpack.c.l.b16 %v353
        %v437 = vunpack.c.h.b16 %v353
        %v438 = vunpack.c.l.b16 %v354
        %v439 = vunpack.c.l.b16 %v355
        %v440 = vunpack.c.h.b16 %v355
        %v441 = vunpack.c.l.b16 %v356
        %v442 = vunpack.c.l.b16 %v357
        %v443 = vunpack.c.h.b16 %v357
        %v444 = vunpack.c.l.b16 %v358
        %v445 = vunpack.c.l.b16 %v359
        %v446 = vunpack.c.h.b16 %v359
        %v447 = vunpack.c.l.b16 %v360
        %v448 = vunpack.c.l.b16 %v361
        %v449 = vunpack.c.h.b16 %v361
        %v450 = vunpack.c.l.b16 %v362
        %v451 = vunpack.c.l.b16 %v363
        %v452 = vunpack.c.h.b16 %v363
        %v453 = vunpack.c.l.b16 %v364
        %v454 = vunpack.c.l.b16 %v365
        %v455 = vunpack.c.h.b16 %v365
        %v456 = vunpack.c.l.b16 %v366
        %v457 = vunpack.c.l.b16 %v367
        %v458 = vunpack.c.h.b16 %v367
        %v459 = vunpack.c.l.b16 %v368
        %v460 = vunpack.c.l.b16 %v369
        %v461 = vunpack.c.h.b16 %v369
        %v462 = vunpack.c.l.b16 %v370
        %v463 = vpack.c.b16 %v418, %v415
        %v464 = vpack.c.b16 %v419, %v416
        %v465 = vpack.c.b16 %v420, %v417
        %v466 = vpack.c.b16 %v424, %v421
        %v467 = vpack.c.b16 %v425, %v422
        %v468 = vpack.c.b16 %v426, %v423
        %v469 = vpack.c.b16 %v430, %v427
        %v470 = vpack.c.b16 %v431, %v428
        %v471 = vpack.c.b16 %v432, %v429
        %v472 = vpack.c.b16 %v436, %v433
        %v473 = vpack.c.b16 %v437, %v434
        %v474 = vpack.c.b16 %v438, %v435
        %v475 = vpack.c.b16 %v442, %v439
        %v476 = vpack.c.b16 %v443, %v440
        %v477 = vpack.c.b16 %v444, %v441
        %v478 = vpack.c.b16 %v448, %v445
        %v479 = vpack.c.b16 %v449, %v446
        %v480 = vpack.c.b16 %v450, %v447
        %v481 = vpack.c.b16 %v454, %v451
        %v482 = vpack.c.b16 %v455, %v452
        %v483 = vpack.c.b16 %v456, %v453
        %v484 = vpack.c.b16 %v460, %v457
        %v485 = vpack.c.b16 %v461, %v458
        %v486 = vpack.c.b16 %v462, %v459
        %511 = vmatpush.bf16.msra.mxu0 %v484
        %512 = vmatpush.bf16.msra.mxu0 %v481
        %513 = vmatpush.bf16.msra.mxu0 %v478
        %514 = vmatpush.bf16.msra.mxu0 %v475
        %515 = vmatpush.bf16.msra.mxu0 %v472
        %516 = vmatpush.bf16.msra.mxu0 %v469
        %517 = vmatpush.bf16.msra.mxu0 %v466
        %518 = vmatpush.bf16.msra.mxu0 %v463
        %519 = vmatmul.bf16.gmra.mxu0 %v379
        %v520 = vpop.f32.mrf.mxu0
        %v521 = vadd.f32 0.0, %v520
        %v522 = vpop.f32.mrf.mxu0
        %v523 = vadd.f32 0.0, %v522
        %524 = vmatmul.bf16.gmra.mxu0 %v380
        %v525 = vpop.f32.mrf.mxu0
        %v526 = vadd.f32 0.0, %v525
        %v527 = vpop.f32.mrf.mxu0
        %v528 = vadd.f32 0.0, %v527
        %529 = vdwg.mxu0
        %530 = vmatpush.bf16.msra.mxu0 %v485
        %531 = vmatpush.bf16.msra.mxu0 %v482
        %532 = vmatpush.bf16.msra.mxu0 %v479
        %533 = vmatpush.bf16.msra.mxu0 %v476
        %534 = vmatpush.bf16.msra.mxu0 %v473
        %535 = vmatpush.bf16.msra.mxu0 %v470
        %536 = vmatpush.bf16.msra.mxu0 %v467
        %537 = vmatpush.bf16.msra.mxu0 %v464
        %538 = vmatmul.bf16.gmra.mxu0 %v379
        %v539 = vpop.f32.mrf.mxu0
        %v540 = vadd.f32 0.0, %v539
        %v541 = vpop.f32.mrf.mxu0
        %v542 = vadd.f32 0.0, %v541
        %543 = vmatmul.bf16.gmra.mxu0 %v380
        %v544 = vpop.f32.mrf.mxu0
        %v545 = vadd.f32 0.0, %v544
        %v546 = vpop.f32.mrf.mxu0
        %v547 = vadd.f32 0.0, %v546
        %548 = vdwg.mxu0
        %549 = vmatpush.bf16.msra.mxu0 %v486
        %550 = vmatpush.bf16.msra.mxu0 %v483
        %551 = vmatpush.bf16.msra.mxu0 %v480
        %552 = vmatpush.bf16.msra.mxu0 %v477
        %553 = vmatpush.bf16.msra.mxu0 %v474
        %554 = vmatpush.bf16.msra.mxu0 %v471
        %555 = vmatpush.bf16.msra.mxu0 %v468
        %556 = vmatpush.bf16.msra.mxu0 %v465
        %557 = vmatmul.bf16.gmra.mxu0 %v379
        %v558 = vpop.f32.mrf.mxu0
        %v559 = vadd.f32 0.0, %v558
        %v560 = vpop.f32.mrf.mxu0
        %v561 = vadd.f32 0.0, %v560
        %562 = vmatmul.bf16.gmra.mxu0 %v380
        %v563 = vpop.f32.mrf.mxu0
        %v564 = vadd.f32 0.0, %v563
        %v565 = vpop.f32.mrf.mxu0
        %v566 = vadd.f32 0.0, %v565
        %567 = vdwg.mxu0
        %v568 = vld [vmem:[%s4] sm:$0x1]
        %v570 = vperm.slane %v568, 0
        %v572 = vadd.f32 %v521, %v570
        %v573 = vadd.f32 %v523, %v570
        %v574 = vadd.f32 %v526, %v570
        %v575 = vadd.f32 %v528, %v570
        %v576 = vpack.c.bf16 %v540, %v540
        %v577 = vpack.c.bf16 %v542, %v542
        %v578 = vpack.c.bf16 %v545, %v545
        %v579 = vpack.c.bf16 %v547, %v547
        %v580 = vpack.c.bf16 %v559, %v559
        %v581 = vpack.c.bf16 %v561, %v561
        %v582 = vpack.c.bf16 %v564, %v564
        %v583 = vpack.c.bf16 %v566, %v566
        %v584 = vpack.c.bf16 %v572, %v572
        %v585 = vpack.c.bf16 %v573, %v573
        %v586 = vpack.c.bf16 %v574, %v574
        %v587 = vpack.c.bf16 %v575, %v575
        %v588 = vld [vmem:[%s326] sm:$0xff]
        %v589 = vld [vmem:[%s326 + $0x8] sm:$0xff]
        %v590 = vld [vmem:[%s326 + $0x10] sm:$0xff]
        %v591 = vld [vmem:[%s326 + $0x18] sm:$0xff]
        %v592 = vld [vmem:[%s331] sm:$0x1]
        %v593 = vld [vmem:[%s331 + $0x1] sm:$0x1]
        %595 = vset.pattern.permute.xlu0 0
        %596 = vperm.xlu0 %595, %v588
        %v597 = vpop.permute.xlu0 %596
        %600 = vset.pattern.permute.xlu0 0
        %601 = vperm.xlu0 %600, %v589
        %v602 = vpop.permute.xlu0 %601
        %605 = vset.pattern.permute.xlu0 0
        %606 = vperm.xlu0 %605, %v590
        %v607 = vpop.permute.xlu0 %606
        %610 = vset.pattern.permute.xlu0 0
        %611 = vperm.xlu0 %610, %v591
        %v612 = vpop.permute.xlu0 %611
        %v616 = vperm.slane %v592, 0
        %v617 = vperm.slane %v593, 0
        %v620 = vmul.f32 %v597, %v616
        %v621 = vmul.f32 %v602, %v616
        %v622 = vmul.f32 %v607, %v617
        %v623 = vmul.f32 %v612, %v617
        %v626 = vunpack.c.l.b16 %v584
        %v627 = vunpack.c.l.b16 %v585
        %v628 = vpack.c.b16 %v627, %v626
        %630 = vmatpush.bf16.xpose.msra.mxu0 0
        %631 = vmatpush.bf16.xpose.msra.mxu0 0
        %632 = vmatpush.bf16.xpose.msra.mxu0 0
        %633 = vmatpush.bf16.xpose.msra.mxu0 0
        %634 = vmatpush.bf16.xpose.msra.mxu0 0
        %635 = vmatpush.bf16.xpose.msra.mxu0 0
        %636 = vmatpush.bf16.xpose.msra.mxu0 0
        %637 = vmatpush.bf16.xpose.msra.mxu0 %v379
        %638 = vmatmul.bf16.gmra.mxu0 %v628
        %v639 = vpop.f32.mrf.mxu0
        %v640 = vadd.f32 %v620, %v639
        %v641 = vpop.f32.mrf.mxu0
        %v642 = vadd.f32 %v621, %v641
        %643 = vdwg.mxu0
        %v646 = vunpack.c.l.b16 %v586
        %v647 = vunpack.c.l.b16 %v587
        %v648 = vpack.c.b16 %v647, %v646
        %650 = vmatpush.bf16.xpose.msra.mxu0 0
        %651 = vmatpush.bf16.xpose.msra.mxu0 0
        %652 = vmatpush.bf16.xpose.msra.mxu0 0
        %653 = vmatpush.bf16.xpose.msra.mxu0 0
        %654 = vmatpush.bf16.xpose.msra.mxu0 0
        %655 = vmatpush.bf16.xpose.msra.mxu0 0
        %656 = vmatpush.bf16.xpose.msra.mxu0 0
        %657 = vmatpush.bf16.xpose.msra.mxu0 %v380
        %658 = vmatmul.bf16.gmra.mxu0 %v648
        %v659 = vpop.f32.mrf.mxu0
        %v660 = vadd.f32 %v622, %v659
        %v661 = vpop.f32.mrf.mxu0
        %v662 = vadd.f32 %v623, %v661
        %663 = vdwg.mxu0
        %v664 = vlaneseq
        %v665 = vand.u32 %v664, 127
        %vm666 = vcmp.lt.s32.totalorder %v665, 8
        %v667 = vsel %vm666, 1, 0
        %vm668 = vcmp.eq.s32.totalorder %v667, 1
        %v669 = vsel %vm668, %v640, -1e+09
        %v670 = vsel %vm668, %v642, -1e+09
        %v671 = vsel %vm668, %v660, -1e+09
        %v672 = vsel %vm668, %v662, -1e+09
        %vm673 = vcmask 130048
        %v674 = vsel %vm673, %v669, -inf
        %675 = vmax.xlane.f32.xlu0 %v674
        %v676 = vpop.xlane.xlu0 %675
        %v677 = vsel %vm673, %v670, -inf
        %678 = vmax.xlane.f32.xlu0 %v677
        %v679 = vpop.xlane.xlu0 %678
        %v680 = vsel %vm673, %v671, -inf
        %681 = vmax.xlane.f32.xlu0 %v680
        %v682 = vpop.xlane.xlu0 %681
        %v683 = vsel %vm673, %v672, -inf
        %684 = vmax.xlane.f32.xlu0 %v683
        %v685 = vpop.xlane.xlu0 %684
        %v686 = vsub.f32 %v669, %v676
        %v687 = vsub.f32 %v670, %v679
        %v688 = vsub.f32 %v671, %v682
        %v689 = vsub.f32 %v672, %v685
        %v690 = vmul.f32 %v686, 1.442695
        %v691 = vpow.pop %v690
        %v692 = vmul.f32 %v687, 1.442695
        %v693 = vpow.pop %v692
        %v694 = vmul.f32 %v688, 1.442695
        %v695 = vpow.pop %v694
        %v696 = vmul.f32 %v689, 1.442695
        %v697 = vpow.pop %v696
        %v698 = vsel %vm673, %v691, 0.0
        %699 = vadd.xlane.f32.xlu0 %v698
        %v700 = vpop.xlane.xlu0 %699
        %v701 = vsel %vm673, %v693, 0.0
        %702 = vadd.xlane.f32.xlu0 %v701
        %v703 = vpop.xlane.xlu0 %702
        %v704 = vsel %vm673, %v695, 0.0
        %705 = vadd.xlane.f32.xlu0 %v704
        %v706 = vpop.xlane.xlu0 %705
        %v707 = vsel %vm673, %v697, 0.0
        %708 = vadd.xlane.f32.xlu0 %v707
        %v709 = vpop.xlane.xlu0 %708
        %v710 = vrcp.pop %v700
        %v711 = vrcp.pop %v703
        %v712 = vrcp.pop %v706
        %v713 = vrcp.pop %v709
        %v714 = vmul.f32 %v691, %v710
        %v715 = vmul.f32 %v693, %v711
        %v716 = vmul.f32 %v695, %v712
        %v717 = vmul.f32 %v697, %v713
        %v718 = vpack.c.bf16 %v714, %v714
        %v719 = vpack.c.bf16 %v715, %v715
        %v720 = vpack.c.bf16 %v716, %v716
        %v721 = vpack.c.bf16 %v717, %v717
        %v724 = vunpack.c.l.b16 %v718
        %v725 = vunpack.c.l.b16 %v719
        %v726 = vpack.c.b16 %v725, %v724
        %v728 = vsel %vm673, %v726, 0
        %730 = vmatpush.bf16.msra.mxu0 0
        %731 = vmatpush.bf16.msra.mxu0 0
        %732 = vmatpush.bf16.msra.mxu0 0
        %733 = vmatpush.bf16.msra.mxu0 0
        %734 = vmatpush.bf16.msra.mxu0 0
        %735 = vmatpush.bf16.msra.mxu0 0
        %736 = vmatpush.bf16.msra.mxu0 0
        %737 = vmatpush.bf16.msra.mxu0 %v379
        %738 = vmatmul.bf16.gmra.mxu0 %v728
        %v739 = vpop.f32.mrf.mxu0
        %v740 = vadd.f32 0.0, %v739
        %v741 = vpop.f32.mrf.mxu0
        %v742 = vadd.f32 0.0, %v741
        %743 = vdwg.mxu0
        %v746 = vunpack.c.l.b16 %v720
        %v747 = vunpack.c.l.b16 %v721
        %v748 = vpack.c.b16 %v747, %v746
        %v750 = vsel %vm673, %v748, 0
        %752 = vmatpush.bf16.msra.mxu0 0
        %753 = vmatpush.bf16.msra.mxu0 0
        %754 = vmatpush.bf16.msra.mxu0 0
        %755 = vmatpush.bf16.msra.mxu0 0
        %756 = vmatpush.bf16.msra.mxu0 0
        %757 = vmatpush.bf16.msra.mxu0 0
        %758 = vmatpush.bf16.msra.mxu0 0
        %759 = vmatpush.bf16.msra.mxu0 %v380
        %760 = vmatmul.bf16.gmra.mxu0 %v750
        %v761 = vpop.f32.mrf.mxu0
        %v762 = vadd.f32 0.0, %v761
        %v763 = vpop.f32.mrf.mxu0
        %v764 = vadd.f32 0.0, %v763
        %765 = vdwg.mxu0
        %v766 = vpack.c.bf16 %v740, %v740
        %v767 = vpack.c.bf16 %v742, %v742
        %v768 = vpack.c.bf16 %v762, %v762
        %v769 = vpack.c.bf16 %v764, %v764
        %v770 = vld [vmem:[#allocation5] sm:$0xff]
        %v771 = vld [vmem:[#allocation5 + $0x8] sm:$0xff]
        %v772 = vld [vmem:[#allocation5 + $0x10] sm:$0xff]
        %v773 = vld [vmem:[#allocation5 + $0x18] sm:$0xff]
        %v774 = vld [vmem:[#allocation5 + $0x20] sm:$0xff]
        %v775 = vld [vmem:[#allocation5 + $0x28] sm:$0xff]
        %v776 = vld [vmem:[#allocation5 + $0x30] sm:$0xff]
        %v777 = vld [vmem:[#allocation5 + $0x38] sm:$0xff]
        %v778 = vld [vmem:[#allocation5 + $0x40] sm:$0xff]
        %v779 = vld [vmem:[#allocation5 + $0x48] sm:$0xff]
        %v780 = vld [vmem:[#allocation5 + $0x50] sm:$0xff]
        %v781 = vld [vmem:[#allocation5 + $0x58] sm:$0xff]
        %v782 = vld [vmem:[#allocation5 + $0x60] sm:$0xff]
        %v783 = vld [vmem:[#allocation5 + $0x68] sm:$0xff]
        %v784 = vld [vmem:[#allocation5 + $0x70] sm:$0xff]
        %v785 = vld [vmem:[#allocation5 + $0x78] sm:$0xff]
        %v790 = vunpack.c.l.b16 %v766
        %v791 = vunpack.c.l.b16 %v767
        %v792 = vunpack.c.l.b16 %v768
        %v793 = vunpack.c.l.b16 %v769
        %v794 = vpack.c.b16 %v791, %v790
        %v795 = vpack.c.b16 %v793, %v792
        %v814 = vunpack.c.l.b16 %v770
        %v815 = vunpack.c.h.b16 %v770
        %v816 = vunpack.c.l.b16 %v771
        %v817 = vunpack.c.h.b16 %v771
        %v818 = vunpack.c.l.b16 %v772
        %v819 = vunpack.c.h.b16 %v772
        %v820 = vunpack.c.l.b16 %v773
        %v821 = vunpack.c.h.b16 %v773
        %v822 = vunpack.c.l.b16 %v774
        %v823 = vunpack.c.h.b16 %v774
        %v824 = vunpack.c.l.b16 %v775
        %v825 = vunpack.c.h.b16 %v775
        %v826 = vunpack.c.l.b16 %v776
        %v827 = vunpack.c.h.b16 %v776
        %v828 = vunpack.c.l.b16 %v777
        %v829 = vunpack.c.h.b16 %v777
        %v830 = vunpack.c.l.b16 %v778
        %v831 = vunpack.c.h.b16 %v778
        %v832 = vunpack.c.l.b16 %v779
        %v833 = vunpack.c.h.b16 %v779
        %v834 = vunpack.c.l.b16 %v780
        %v835 = vunpack.c.h.b16 %v780
        %v836 = vunpack.c.l.b16 %v781
        %v837 = vunpack.c.h.b16 %v781
        %v838 = vunpack.c.l.b16 %v782
        %v839 = vunpack.c.h.b16 %v782
        %v840 = vunpack.c.l.b16 %v783
        %v841 = vunpack.c.h.b16 %v783
        %v842 = vunpack.c.l.b16 %v784
        %v843 = vunpack.c.h.b16 %v784
        %v844 = vunpack.c.l.b16 %v785
        %v845 = vunpack.c.h.b16 %v785
        %v846 = vpack.c.b16 %v816, %v814
        %v847 = vpack.c.b16 %v817, %v815
        %v848 = vpack.c.b16 %v820, %v818
        %v849 = vpack.c.b16 %v821, %v819
        %v850 = vpack.c.b16 %v824, %v822
        %v851 = vpack.c.b16 %v825, %v823
        %v852 = vpack.c.b16 %v828, %v826
        %v853 = vpack.c.b16 %v829, %v827
        %v854 = vpack.c.b16 %v832, %v830
        %v855 = vpack.c.b16 %v833, %v831
        %v856 = vpack.c.b16 %v836, %v834
        %v857 = vpack.c.b16 %v837, %v835
        %v858 = vpack.c.b16 %v840, %v838
        %v859 = vpack.c.b16 %v841, %v839
        %v860 = vpack.c.b16 %v844, %v842
        %v861 = vpack.c.b16 %v845, %v843
        %878 = vmatpush.bf16.msra.mxu0 %v860
        %879 = vmatpush.bf16.msra.mxu0 %v858
        %880 = vmatpush.bf16.msra.mxu0 %v856
        %881 = vmatpush.bf16.msra.mxu0 %v854
        %882 = vmatpush.bf16.msra.mxu0 %v852
        %883 = vmatpush.bf16.msra.mxu0 %v850
        %884 = vmatpush.bf16.msra.mxu0 %v848
        %885 = vmatpush.bf16.msra.mxu0 %v846
        %886 = vmatmul.bf16.gmra.mxu0 %v794
        %v887 = vpop.f32.mrf.mxu0
        %v888 = vadd.f32 0.0, %v887
        %v889 = vpop.f32.mrf.mxu0
        %v890 = vadd.f32 0.0, %v889
        %891 = vmatmul.bf16.gmra.mxu0 %v795
        %v892 = vpop.f32.mrf.mxu0
        %v893 = vadd.f32 0.0, %v892
        %v894 = vpop.f32.mrf.mxu0
        %v895 = vadd.f32 0.0, %v894
        %896 = vdwg.mxu0
        %897 = vmatpush.bf16.msra.mxu0 %v861
        %898 = vmatpush.bf16.msra.mxu0 %v859
        %899 = vmatpush.bf16.msra.mxu0 %v857
        %900 = vmatpush.bf16.msra.mxu0 %v855
        %901 = vmatpush.bf16.msra.mxu0 %v853
        %902 = vmatpush.bf16.msra.mxu0 %v851
        %903 = vmatpush.bf16.msra.mxu0 %v849
        %904 = vmatpush.bf16.msra.mxu0 %v847
        %905 = vmatmul.bf16.gmra.mxu0 %v794
        %v906 = vpop.f32.mrf.mxu0
        %v907 = vadd.f32 0.0, %v906
        %v908 = vpop.f32.mrf.mxu0
        %v909 = vadd.f32 0.0, %v908
        %910 = vmatmul.bf16.gmra.mxu0 %v795
        %v911 = vpop.f32.mrf.mxu0
        %v912 = vadd.f32 0.0, %v911
        %v913 = vpop.f32.mrf.mxu0
        %v914 = vadd.f32 0.0, %v913
        %915 = vdwg.mxu0
        %v916 = vunpack.c.l.bf16 %v576
        %v917 = vunpack.c.l.bf16 %v577
        %v918 = vunpack.c.l.bf16 %v578
        %v919 = vunpack.c.l.bf16 %v579
        %v920 = vadd.f32 %v916, %v888
        %v921 = vadd.f32 %v917, %v890
        %v922 = vadd.f32 %v918, %v893
        %v923 = vadd.f32 %v919, %v895
        %v924 = vtanh.pop %v920
        %v925 = vtanh.pop %v921
        %v926 = vtanh.pop %v922
        %v927 = vtanh.pop %v923
        %v928 = vunpack.c.l.bf16 %v580
        %v929 = vunpack.c.l.bf16 %v581
        %v930 = vunpack.c.l.bf16 %v582
        %v931 = vunpack.c.l.bf16 %v583
        %v932 = vadd.f32 %v928, %v907
        %v933 = vadd.f32 %v929, %v909
        %v934 = vadd.f32 %v930, %v912
        %v935 = vadd.f32 %v931, %v914
        %v936 = vxor.u32 %v932, 2147483648
        %v937 = vxor.u32 %v933, 2147483648
        %v938 = vxor.u32 %v934, 2147483648
        %v939 = vxor.u32 %v935, 2147483648
        %v940 = vmul.f32 %v936, 1.442695
        %v941 = vpow.pop %v940
        %v942 = vmul.f32 %v937, 1.442695
        %v943 = vpow.pop %v942
        %v944 = vmul.f32 %v938, 1.442695
        %v945 = vpow.pop %v944
        %v946 = vmul.f32 %v939, 1.442695
        %v947 = vpow.pop %v946
        %v948 = vadd.f32 %v941, 1.0
        %v949 = vadd.f32 %v943, 1.0
        %v950 = vadd.f32 %v945, 1.0
        %v951 = vadd.f32 %v947, 1.0
        %v952 = vrcp.pop %v948
        %v953 = vmul.f32 %v948, %v952
        %v954 = vsub.f32 1.0, %v953
        %v955 = vmul.f32 %v952, %v954
        %v956 = vadd.f32 %v952, %v955
        %vm957 = vweird.f32 %v948
        %vm958 = vweird.f32 %v952
        %vm959 = vmor %vm957, %vm958
        %v960 = vsel %vm959, %v952, %v956
        %v961 = vand.u32 2147483647, %v948
        %vm962 = vcmp.eq.f32.partialorder %v961, 8.507059e+37
        %v963 = vand.u32 %v948, 2147483648
        %v964 = vor.u32 1.1754944e-38, %v963
        %v965 = vsel %vm962, %v964, %v960
        %v966 = vmul.f32 1.0, %v965
        %v967 = vrcp.pop %v949
        %v968 = vmul.f32 %v949, %v967
        %v969 = vsub.f32 1.0, %v968
        %v970 = vmul.f32 %v967, %v969
        %v971 = vadd.f32 %v967, %v970
        %vm972 = vweird.f32 %v949
        %vm973 = vweird.f32 %v967
        %vm974 = vmor %vm972, %vm973
        %v975 = vsel %vm974, %v967, %v971
        %v976 = vand.u32 2147483647, %v949
        %vm977 = vcmp.eq.f32.partialorder %v976, 8.507059e+37
        %v978 = vand.u32 %v949, 2147483648
        %v979 = vor.u32 1.1754944e-38, %v978
        %v980 = vsel %vm977, %v979, %v975
        %v981 = vmul.f32 1.0, %v980
        %v982 = vrcp.pop %v950
        %v983 = vmul.f32 %v950, %v982
        %v984 = vsub.f32 1.0, %v983
        %v985 = vmul.f32 %v982, %v984
        %v986 = vadd.f32 %v982, %v985
        %vm987 = vweird.f32 %v950
        %vm988 = vweird.f32 %v982
        %vm989 = vmor %vm987, %vm988
        %v990 = vsel %vm989, %v982, %v986
        %v991 = vand.u32 2147483647, %v950
        %vm992 = vcmp.eq.f32.partialorder %v991, 8.507059e+37
        %v993 = vand.u32 %v950, 2147483648
        %v994 = vor.u32 1.1754944e-38, %v993
        %v995 = vsel %vm992, %v994, %v990
        %v996 = vmul.f32 1.0, %v995
        %v997 = vrcp.pop %v951
        %v998 = vmul.f32 %v951, %v997
        %v999 = vsub.f32 1.0, %v998
        %v1000 = vmul.f32 %v997, %v999
        %v1001 = vadd.f32 %v997, %v1000
        %vm1002 = vweird.f32 %v951
        %vm1003 = vweird.f32 %v997
        %vm1004 = vmor %vm1002, %vm1003
        %v1005 = vsel %vm1004, %v997, %v1001
        %v1006 = vand.u32 2147483647, %v951
        %vm1007 = vcmp.eq.f32.partialorder %v1006, 8.507059e+37
        %v1008 = vand.u32 %v951, 2147483648
        %v1009 = vor.u32 1.1754944e-38, %v1008
        %v1010 = vsel %vm1007, %v1009, %v1005
        %v1011 = vmul.f32 1.0, %v1010
        %v1012 = vunpack.c.l.bf16 %v335
        %v1013 = vunpack.c.l.bf16 %v336
        %v1014 = vunpack.c.l.bf16 %v337
        %v1015 = vunpack.c.l.bf16 %v338
        %v1016 = vsub.f32 %v924, %v1012
        %v1017 = vsub.f32 %v925, %v1013
        %v1018 = vsub.f32 %v926, %v1014
        %v1019 = vsub.f32 %v927, %v1015
        %v1020 = vmul.f32 %v966, %v1016
        %v1021 = vmul.f32 %v981, %v1017
        %v1022 = vmul.f32 %v996, %v1018
        %v1023 = vmul.f32 %v1011, %v1019
        %v1024 = vadd.f32 %v1012, %v1020
        %v1025 = vadd.f32 %v1013, %v1021
        %v1026 = vadd.f32 %v1014, %v1022
        %v1027 = vadd.f32 %v1015, %v1023
        %1028 = vst [vmem:[%s313] sm:$0xff] %v1024
        %1029 = vst [vmem:[%s313 + $0x8] sm:$0xff] %v1025
        %1030 = vst [vmem:[%s313 + $0x10] sm:$0xff] %v1026
        %1031 = vst [vmem:[%s313 + $0x18] sm:$0xff] %v1027
        %s1032 = sand.u32 %s171, 1
        %s1033 = scalar_lea.sflag [#allocation4], %s1032
        %s1034 = sand.u32 %s171, 1
        %s1035 = smul.addr %s1034, 32
        %s1036 = scalar_lea.vmem [#allocation7], %s1035
        // Predicated region
        $region53: #{tpu_custom_call.1} parent=43 // pred_check
          %p1037 = pneg %p181
        $region54: #{tpu_custom_call.1} parent=43 // pred_check_branch
          %1039 = sbr.rel (%p1037) target = $region56
        $region55: #{tpu_custom_call.1} parent=43 // pred_region
          %s1040 = smul.u32 2, %s22
          %1042 = vsyncadd %s1033, 0
          %s1043 = smul.addr %s1040, 2
          %s1044 = smul.addr %s1043, 8
          %s1045 = scalar_lea.hbm %s6, %s1044
          %s1046 = sshll.u32 %s1036, 4
          %s1047 = int_to_ptr.vmem [resolvable:$true] %s1046
          %s1048 = sshll.u32 %s1045, 4
          %s1049 = int_to_ptr.hbm [resolvable:$true] %s1048
          %1054 = dma.vmem_to_hbm [thread:$0]  %s1047, 512, %s1049, %s1033, 128, 128, 8
        $region56: #{tpu_custom_call.1} parent=43 // pred_fallthru
          _
      $region44: #{tpu_custom_call.1} parent=5 // pred_fallthru
        _
      %p1055 = scmp.le.s32.totalorder 2, %s17
      // Predicated region
      $region57: #{tpu_custom_call.1} parent=5 // pred_check
        %p1056 = pneg %p1055
      $region58: #{tpu_custom_call.1} parent=5 // pred_check_branch
        %1058 = sbr.rel (%p1056) target = $region60
      $region59: #{tpu_custom_call.1} parent=5 // pred_region
        %s1059 = ssub.s32 %s17, 2
        // Predicated region
        $region61: #{tpu_custom_call.1} parent=59 // pred_check
          %p1060 = pneg %p187
        $region62: #{tpu_custom_call.1} parent=59 // pred_check_branch
          %1062 = sbr.rel (%p1060) target = $region64
        $region63: #{tpu_custom_call.1} parent=59 // pred_region
          %s1063 = sand.u32 %s172, 1
          %s1064 = scalar_lea.sflag [#allocation4], %s1063
          %s1065 = sand.u32 %s172, 1
          %s1066 = smul.addr %s1065, 32
          %s1067 = scalar_lea.vmem [#allocation7], %s1066
          %1069 = dma.done %s1064, 512
        $region64: #{tpu_custom_call.1} parent=59 // pred_fallthru
          _
      $region60: #{tpu_custom_call.1} parent=5 // pred_fallthru
        _
    $region6: #{tpu_custom_call.1} parent=1 // loop_footer
      %s21 = sadd.s32 1, %s17
    $region7: #{tpu_custom_call.1} parent=1 // loop_footer_branch
      %16 = sbr.rel target = $region3
    $region8: #{tpu_custom_call.1} parent=1 // loop_exit
      _
    %1070 = vsyncpa [#allocation3], 1
    %s1071 = scalar_lea.sflag [#allocation3], 1
    %1072 = vsyncpa %s1071, 1
    %1073 = vsyncpa [#allocation6], 1
    %1074 = vsyncpa [#allocation4], 1
    %s1075 = scalar_lea.sflag [#allocation4], 1
    %1076 = vsyncpa %s1075, 1

// kernel: tpu_custom_call.1
$region0: #{tpu_custom_call.1}
  #allocation0 [shape = 'u32[]', space=smem, size = 0x4, offset = 0x4, fixed_abs, tag = 'smem constant byte address 0x4 - core index']
  #allocation1 [shape = 'u32[72,128]{1,0:T(1,128)}', space=vmem, size = 0x9000, scoped, tag = 'internal scratch']
  %s0 = inlined_call_operand.vmem [shape: bf16[4,16,128], index: 0, kind: input, shape index: {}]
  %s1 = inlined_call_operand.vmem [shape: f32[4,16,1], index: 1, kind: input, shape index: {}]
  %s2 = inlined_call_operand.vmem [shape: f32[4,1,16], index: 2, kind: input, shape index: {}]
  %s3 = inlined_call_operand.hbm [shape: bf16[128,384], index: 3, kind: input, shape index: {}]
  %s4 = inlined_call_operand.vmem [shape: f32[1,1,128], index: 4, kind: input, shape index: {}]
  %s5 = inlined_call_operand.hbm [shape: bf16[128,256], index: 5, kind: input, shape index: {}]
  %s6 = inlined_call_operand.hbm [shape: f32[4,16,128], index: 6, kind: output, shape index: {}]
  %s7 = sld [smem:[#allocation0]]
  $region65: #{tpu_custom_call.1} parent=0
    _
  %s9 = ssub.s32 1, %s7
  %s10 = scalar_select 0, %s9, %s7
  $region1: #{tpu_custom_call.1} parent=0
    #allocation2 [shape = 'u8[98304]{0}', space=vmem, size = 0x18000, scoped, tag = 'input window, operand 3, single buffered']
    #allocation3 [shape = 's32[2]{0}', space=sflag, size = 0x8, scoped, tag = 'scoped memory for tpu_custom_call.1']
    #allocation4 [shape = 's32[2]{0}', space=sflag, size = 0x8, scoped, tag = 'scoped memory for tpu_custom_call.1']
    #allocation5 [shape = 'u8[65536]{0}', space=vmem, size = 0x10000, scoped, tag = 'input window, operand 5, single buffered']
    #allocation6 [shape = 's32[1]{0}', space=sflag, size = 0x4, scoped, tag = 'scoped memory for tpu_custom_call.1']
    #allocation7 [shape = 'u8[32768]{0}', space=vmem, size = 0x8000, scoped, tag = 'output window, operand 0']
    %11 = vsyncpa [#allocation3], 0
    %12 = vsyncpa [#allocation6], 0
    %13 = vsyncpa [#allocation4], 0
    %s14 = scalar_lea.sflag [#allocation4], 1
    %15 = vsyncpa %s14, 0
    loop: start=0, step=1, limit=4
    $region2: #{tpu_custom_call.1} parent=1 // loop_pre_header
      _
    $region3: #{tpu_custom_call.1} parent=1 // loop_header
      %s17 = sphi 0, %s21
      %p18 = scmp.ge.s32.totalorder %s17, 4
      %s27 = sphi 0, %s29
      %s30 = sphi 0, %s27
      %s31 = sphi 0, %s30
      %s47 = sphi 0, %s31
      %s53 = sphi 0, %s55
      %s56 = sphi 0, %s53
      %s57 = sphi 0, %s56
      %s73 = sphi 0, %s57
      %s79 = sphi 0, %s81
      %s82 = sphi 0, %s79
      %s83 = sphi 0, %s82
      %s99 = sphi 0, %s83
      %s103 = sphi 0, %s103
      %s105 = sphi 0, %s103
      %s106 = sphi 0, %s105
      %s120 = sphi 0, %s106
      %s124 = sphi 0, %s124
      %s126 = sphi 0, %s124
      %s127 = sphi 0, %s126
      %s141 = sphi 0, %s127
      %s145 = sphi 0, %s145
      %s147 = sphi 0, %s145
      %s148 = sphi 0, %s147
      %s162 = sphi 0, %s148
      %s168 = sphi 0, %s170
      %s171 = sphi 0, %s168
      %s172 = sphi 0, %s171
      %s188 = sphi 0, %s172
    $region4: #{tpu_custom_call.1} parent=1 // loop_header_branch
      %20 = sbr.rel (%p18) target = $region8
    $region5: #{tpu_custom_call.1} parent=1 // loop_body
      %s22 = ssub.s32 %s17, 1
      %s23 = ssub.s32 %s17, 2
      %s24 = sadd.s32 %s17, 1
      %s25 = ssub.s32 %s17, %s24
      %p26 = scmp.eq.s32.totalorder %s25, 0
      %s28 = sadd.s32 %s27, 1
      %s29 = scalar_select %p26, %s27, %s28
      %p32 = pneg %p26
      %p33 = scmp.eq.s32.totalorder %s17, 1
      %p34 = por %p32, %p33
      %p35 = scmp.ne.s32.totalorder %s27, %s30
      %p36 = scmp.eq.s32.totalorder %s17, 0
      %p37 = por %p35, %p36
      %p38 = scmp.ne.s32.totalorder %s27, %s30
      %p39 = scmp.eq.s32.totalorder %s22, 1
      %p40 = por %p38, %p39
      %p41 = scmp.ne.s32.totalorder %s30, %s31
      %p42 = scmp.eq.s32.totalorder %s22, 0
      %p43 = por %p41, %p42
      %p44 = scmp.ne.s32.totalorder %s30, %s31
      %p45 = scmp.eq.s32.totalorder %s23, 1
      %p46 = por %p44, %p45
      %p48 = scmp.ne.s32.totalorder %s31, %s47
      %p49 = scmp.eq.s32.totalorder %s23, 0
      %p50 = por %p48, %p49
      %s51 = ssub.s32 %s17, %s24
      %p52 = scmp.eq.s32.totalorder %s51, 0
      %s54 = sadd.s32 %s53, 1
      %s55 = scalar_select %p52, %s53, %s54
      %p58 = pneg %p52
      %p59 = scmp.eq.s32.totalorder %s17, 1
      %p60 = por %p58, %p59
      %p61 = scmp.ne.s32.totalorder %s53, %s56
      %p62 = scmp.eq.s32.totalorder %s17, 0
      %p63 = por %p61, %p62
      %p64 = scmp.ne.s32.totalorder %s53, %s56
      %p65 = scmp.eq.s32.totalorder %s22, 1
      %p66 = por %p64, %p65
      %p67 = scmp.ne.s32.totalorder %s56, %s57
      %p68 = scmp.eq.s32.totalorder %s22, 0
      %p69 = por %p67, %p68
      %p70 = scmp.ne.s32.totalorder %s56, %s57
      %p71 = scmp.eq.s32.totalorder %s23, 1
      %p72 = por %p70, %p71
      %p74 = scmp.ne.s32.totalorder %s57, %s73
      %p75 = scmp.eq.s32.totalorder %s23, 0
      %p76 = por %p74, %p75
      %s77 = ssub.s32 %s17, %s24
      %p78 = scmp.eq.s32.totalorder %s77, 0
      %s80 = sadd.s32 %s79, 1
      %s81 = scalar_select %p78, %s79, %s80
      %p84 = pneg %p78
      %p85 = scmp.eq.s32.totalorder %s17, 1
      %p86 = por %p84, %p85
      %p87 = scmp.ne.s32.totalorder %s79, %s82
      %p88 = scmp.eq.s32.totalorder %s17, 0
      %p89 = por %p87, %p88
      %p90 = scmp.ne.s32.totalorder %s79, %s82
      %p91 = scmp.eq.s32.totalorder %s22, 1
      %p92 = por %p90, %p91
      %p93 = scmp.ne.s32.totalorder %s82, %s83
      %p94 = scmp.eq.s32.totalorder %s22, 0
      %p95 = por %p93, %p94
      %p96 = scmp.ne.s32.totalorder %s82, %s83
      %p97 = scmp.eq.s32.totalorder %s23, 1
      %p98 = por %p96, %p97
      %p100 = scmp.ne.s32.totalorder %s83, %s99
      %p101 = scmp.eq.s32.totalorder %s23, 0
      %p102 = por %p100, %p101
      %s104 = sadd.s32 %s103, 1
      %p107 = scmp.eq.s32.totalorder %s17, 1
      %p108 = scmp.ne.s32.totalorder %s103, %s105
      %p109 = scmp.eq.s32.totalorder %s17, 0
      %p110 = por %p108, %p109
      %p111 = scmp.ne.s32.totalorder %s103, %s105
      %p112 = scmp.eq.s32.totalorder %s22, 1
      %p113 = por %p111, %p112
      %p114 = scmp.ne.s32.totalorder %s105, %s106
      %p115 = scmp.eq.s32.totalorder %s22, 0
      %p116 = por %p114, %p115
      %p117 = scmp.ne.s32.totalorder %s105, %s106
      %p118 = scmp.eq.s32.totalorder %s23, 1
      %p119 = por %p117, %p118
      %p121 = scmp.ne.s32.totalorder %s106, %s120
      %p122 = scmp.eq.s32.totalorder %s23, 0
      %p123 = por %p121, %p122
      %s125 = sadd.s32 %s124, 1
      %p128 = scmp.eq.s32.totalorder %s17, 1
      %p129 = scmp.ne.s32.totalorder %s124, %s126
      %p130 = scmp.eq.s32.totalorder %s17, 0
      %p131 = por %p129, %p130
      %p132 = scmp.ne.s32.totalorder %s124, %s126
      %p133 = scmp.eq.s32.totalorder %s22, 1
      %p134 = por %p132, %p133
      %p135 = scmp.ne.s32.totalorder %s126, %s127
      %p136 = scmp.eq.s32.totalorder %s22, 0
      %p137 = por %p135, %p136
      %p138 = scmp.ne.s32.totalorder %s126, %s127
      %p139 = scmp.eq.s32.totalorder %s23, 1
      %p140 = por %p138, %p139
      %p142 = scmp.ne.s32.totalorder %s127, %s141
      %p143 = scmp.eq.s32.totalorder %s23, 0
      %p144 = por %p142, %p143
      %s146 = sadd.s32 %s145, 1
      %p149 = scmp.eq.s32.totalorder %s17, 1
      %p150 = scmp.ne.s32.totalorder %s145, %s147
      %p151 = scmp.eq.s32.totalorder %s17, 0
      %p152 = por %p150, %p151
      %p153 = scmp.ne.s32.totalorder %s145, %s147
      %p154 = scmp.eq.s32.totalorder %s22, 1
      %p155 = por %p153, %p154
      %p156 = scmp.ne.s32.totalorder %s147, %s148
      %p157 = scmp.eq.s32.totalorder %s22, 0
      %p158 = por %p156, %p157
      %p159 = scmp.ne.s32.totalorder %s147, %s148
      %p160 = scmp.eq.s32.totalorder %s23, 1
      %p161 = por %p159, %p160
      %p163 = scmp.ne.s32.totalorder %s148, %s162
      %p164 = scmp.eq.s32.totalorder %s23, 0
      %p165 = por %p163, %p164
      %s166 = ssub.s32 %s17, %s24
      %p167 = scmp.eq.s32.totalorder %s166, 0
      %s169 = sadd.s32 %s168, 1
      %s170 = scalar_select %p167, %s168, %s169
      %p173 = pneg %p167
      %p174 = scmp.eq.s32.totalorder %s17, 1
      %p175 = por %p173, %p174
      %p176 = scmp.ne.s32.totalorder %s168, %s171
      %p177 = scmp.eq.s32.totalorder %s17, 0
      %p178 = por %p176, %p177
      %p179 = scmp.ne.s32.totalorder %s168, %s171
      %p180 = scmp.eq.s32.totalorder %s22, 1
      %p181 = por %p179, %p180
      %p182 = scmp.ne.s32.totalorder %s171, %s172
      %p183 = scmp.eq.s32.totalorder %s22, 0
      %p184 = por %p182, %p183
      %p185 = scmp.ne.s32.totalorder %s171, %s172
      %p186 = scmp.eq.s32.totalorder %s23, 1
      %p187 = por %p185, %p186
      %p189 = scmp.ne.s32.totalorder %s172, %s188
      %p190 = scmp.eq.s32.totalorder %s23, 0
      %p191 = por %p189, %p190
      %p192 = scmp.le.s32.totalorder 1, %s17
      %p193 = scmp.lt.s32.totalorder %s17, 3
      %p194 = pnand %p192, %p193
      %p195 = pneg %p194
      // Predicated region
      $region9: #{tpu_custom_call.1} parent=5 // pred_check
        _
      $region10: #{tpu_custom_call.1} parent=5 // pred_check_branch
        %197 = sbr.rel (%p194) target = $region12
      $region11: #{tpu_custom_call.1} parent=5 // pred_region
        %s198 = ssub.s32 %s17, 1
        // Predicated region
        $region13: #{tpu_custom_call.1} parent=11 // pred_check
          %p199 = pneg %p116
        $region14: #{tpu_custom_call.1} parent=11 // pred_check_branch
          %201 = sbr.rel (%p199) target = $region16
        $region15: #{tpu_custom_call.1} parent=11 // pred_region
          %203 = vsyncadd [#allocation3], 0
          %s204 = sshll.u32 %s3, 4
          %s205 = int_to_ptr.hbm [resolvable:$true] %s204
          %s206 = sshll.u32 [#allocation2], 4
          %s207 = int_to_ptr.vmem [resolvable:$true] %s206
          %212 = dma.hbm_to_vmem [thread:$0]  %s205, 3072, %s207, [#allocation3], 192, 192, 12
        $region16: #{tpu_custom_call.1} parent=11 // pred_fallthru
          _
        // Predicated region
        $region17: #{tpu_custom_call.1} parent=11 // pred_check
          %p213 = pneg %p137
        $region18: #{tpu_custom_call.1} parent=11 // pred_check_branch
          %215 = sbr.rel (%p213) target = $region20
        $region19: #{tpu_custom_call.1} parent=11 // pred_region
          _
        $region20: #{tpu_custom_call.1} parent=11 // pred_fallthru
          _
        // Predicated region
        $region21: #{tpu_custom_call.1} parent=11 // pred_check
          %p216 = pneg %p158
        $region22: #{tpu_custom_call.1} parent=11 // pred_check_branch
          %218 = sbr.rel (%p216) target = $region24
        $region23: #{tpu_custom_call.1} parent=11 // pred_region
          %220 = vsyncadd [#allocation6], 0
          %s221 = sshll.u32 %s5, 4
          %s222 = int_to_ptr.hbm [resolvable:$true] %s221
          %s223 = sshll.u32 [#allocation5], 4
          %s224 = int_to_ptr.vmem [resolvable:$true] %s223
          %229 = dma.hbm_to_vmem [thread:$0]  %s222, 2048, %s224, [#allocation6], 128, 128, 8
        $region24: #{tpu_custom_call.1} parent=11 // pred_fallthru
          _
      $region12: #{tpu_custom_call.1} parent=5 // pred_fallthru
        _
      %p230 = scmp.lt.s32.totalorder %s17, 2
      // Predicated region
      $region25: #{tpu_custom_call.1} parent=5 // pred_check
        %p231 = pneg %p230
      $region26: #{tpu_custom_call.1} parent=5 // pred_check_branch
        %233 = sbr.rel (%p231) target = $region28
      $region27: #{tpu_custom_call.1} parent=5 // pred_region
        // Predicated region
        $region29: #{tpu_custom_call.1} parent=27 // pred_check
          %p234 = pneg %p37
        $region30: #{tpu_custom_call.1} parent=27 // pred_check_branch
          %236 = sbr.rel (%p234) target = $region32
        $region31: #{tpu_custom_call.1} parent=27 // pred_region
          %s237 = smul.u32 2, %s17
          %p238 = scmp.lt.s32.totalorder %s237, 3
          %s239 = scalar_select %p238, %s237, 3
          %s240 = smul.addr %s239, 2
          %s241 = smul.addr %s240, 4
          %s242 = scalar_lea.vmem %s0, %s241
          %s243 = smul.u32 2, %s17
        $region32: #{tpu_custom_call.1} parent=27 // pred_fallthru
          _
        // Predicated region
        $region33: #{tpu_custom_call.1} parent=27 // pred_check
          %p244 = pneg %p63
        $region34: #{tpu_custom_call.1} parent=27 // pred_check_branch
          %246 = sbr.rel (%p244) target = $region36
        $region35: #{tpu_custom_call.1} parent=27 // pred_region
          %s247 = smul.u32 2, %s17
          %p248 = scmp.lt.s32.totalorder %s247, 3
          %s249 = scalar_select %p248, %s247, 3
          %s250 = smul.addr %s249, 2
          %s251 = smul.addr %s250, 8
          %s252 = scalar_lea.vmem %s1, %s251
          %s253 = smul.u32 2, %s17
        $region36: #{tpu_custom_call.1} parent=27 // pred_fallthru
          _
        // Predicated region
        $region37: #{tpu_custom_call.1} parent=27 // pred_check
          %p254 = pneg %p89
        $region38: #{tpu_custom_call.1} parent=27 // pred_check_branch
          %256 = sbr.rel (%p254) target = $region40
        $region39: #{tpu_custom_call.1} parent=27 // pred_region
          %s257 = smul.u32 2, %s17
          %p258 = scmp.lt.s32.totalorder %s257, 3
          %s259 = scalar_select %p258, %s257, 3
          %s260 = scalar_lea.vmem %s2, %s259
          %s261 = smul.u32 2, %s17
        $region40: #{tpu_custom_call.1} parent=27 // pred_fallthru
          _
      $region28: #{tpu_custom_call.1} parent=5 // pred_fallthru
        _
      %p262 = scmp.le.s32.totalorder 1, %s17
      %p263 = scmp.lt.s32.totalorder %s17, 3
      %p264 = pnand %p262, %p263
      %p265 = pneg %p264
      // Predicated region
      $region41: #{tpu_custom_call.1} parent=5 // pred_check
        _
      $region42: #{tpu_custom_call.1} parent=5 // pred_check_branch
        %267 = sbr.rel (%p264) target = $region44
      $region43: #{tpu_custom_call.1} parent=5 // pred_region
        %s268 = ssub.s32 %s17, 1
        // Predicated region
        $region45: #{tpu_custom_call.1} parent=43 // pred_check
          %p269 = pneg %p116
        $region46: #{tpu_custom_call.1} parent=43 // pred_check_branch
          %271 = sbr.rel (%p269) target = $region48
        $region47: #{tpu_custom_call.1} parent=43 // pred_region
          %273 = dma.done [#allocation3], 3072
        $region48: #{tpu_custom_call.1} parent=43 // pred_fallthru
          _
        // Predicated region
        $region49: #{tpu_custom_call.1} parent=43 // pred_check
          %p274 = pneg %p158
        $region50: #{tpu_custom_call.1} parent=43 // pred_check_branch
          %276 = sbr.rel (%p274) target = $region52
        $region51: #{tpu_custom_call.1} parent=43 // pred_region
          %278 = dma.done [#allocation6], 2048
        $region52: #{tpu_custom_call.1} parent=43 // pred_fallthru
          _
        %s279 = smul.u32 2, %s22
        %p280 = scmp.lt.s32.totalorder %s279, 3
        %s281 = scalar_select %p280, %s279, 3
        %s282 = smul.addr %s281, 2
        %s283 = smul.addr %s282, 4
        %s284 = scalar_lea.vmem %s0, %s283
        %p285 = pneg %p43
        %p286 = pneg %p40
        %s287 = smul.u32 2, %s22
        %p288 = scmp.lt.s32.totalorder %s287, 3
        %s289 = scalar_select %p288, %s287, 3
        %s290 = smul.addr %s289, 2
        %s291 = smul.addr %s290, 8
        %s292 = scalar_lea.vmem %s1, %s291
        %p293 = pneg %p69
        %p294 = pneg %p66
        %s295 = smul.u32 2, %s22
        %p296 = scmp.lt.s32.totalorder %s295, 3
        %s297 = scalar_select %p296, %s295, 3
        %s298 = scalar_lea.vmem %s2, %s297
        %p299 = pneg %p95
        %p300 = pneg %p92
        %p301 = pneg %p116
        %p302 = pneg %p113
        %p303 = pneg %p137
        %p304 = pneg %p134
        %p305 = pneg %p158
        %p306 = pneg %p155
        %p307 = pneg %p184
        %p308 = pneg %p181
        %s309 = sand.u32 %s171, 1
        %s310 = scalar_lea.sflag [#allocation4], %s309
        %s311 = sand.u32 %s171, 1
        %s312 = smul.addr %s311, 32
        %s313 = scalar_lea.vmem [#allocation7], %s312
        %s314 = smul.u32 2, %s22
        %p315 = scmp.lt.s32.totalorder %s314, 3
        %s316 = scalar_select %p315, %s314, 3
        %s317 = smul.addr %s316, 2
        %s318 = smul.addr %s317, 4
        %s319 = scalar_lea.vmem %s0, %s318
        %s320 = smul.u32 2, %s22
        %s321 = smul.u32 2, %s22
        %p322 = scmp.lt.s32.totalorder %s321, 3
        %s323 = scalar_select %p322, %s321, 3
        %s324 = smul.addr %s323, 2
        %s325 = smul.addr %s324, 8
        %s326 = scalar_lea.vmem %s1, %s325
        %s327 = smul.u32 2, %s22
        %s328 = smul.u32 2, %s22
        %p329 = scmp.lt.s32.totalorder %s328, 3
        %s330 = scalar_select %p329, %s328, 3
        %s331 = scalar_lea.vmem %s2, %s330
        %s332 = smul.u32 2, %s22
        %s333 = smul.u32 2, %s22
        %v335 = vld [vmem:[%s319] sm:$0xf]
        %v336 = vld [vmem:[%s319 + $0x4] sm:$0xf]
        %v337 = vld [vmem:[%s319 + $0x8] sm:$0xf]
        %v338 = vld [vmem:[%s319 + $0xc] sm:$0xf]
        %v339 = vld [vmem:[#allocation2] sm:$0xff]
        %v340 = vld [vmem:[#allocation2 + $0x8] sm:$0xf]
        %v341 = vld [vmem:[#allocation2 + $0xc] sm:$0xff]
        %v342 = vld [vmem:[#allocation2 + $0x14] sm:$0xf]
        %v343 = vld [vmem:[#allocation2 + $0x18] sm:$0xff]
        %v344 = vld [vmem:[#allocation2 + $0x20] sm:$0xf]
        %v345 = vld [vmem:[#allocation2 + $0x24] sm:$0xff]
        %v346 = vld [vmem:[#allocation2 + $0x2c] sm:$0xf]
        %v347 = vld [vmem:[#allocation2 + $0x30] sm:$0xff]
        %v348 = vld [vmem:[#allocation2 + $0x38] sm:$0xf]
        %v349 = vld [vmem:[#allocation2 + $0x3c] sm:$0xff]
        %v350 = vld [vmem:[#allocation2 + $0x44] sm:$0xf]
        %v351 = vld [vmem:[#allocation2 + $0x48] sm:$0xff]
        %v352 = vld [vmem:[#allocation2 + $0x50] sm:$0xf]
        %v353 = vld [vmem:[#allocation2 + $0x54] sm:$0xff]
        %v354 = vld [vmem:[#allocation2 + $0x5c] sm:$0xf]
        %v355 = vld [vmem:[#allocation2 + $0x60] sm:$0xff]
        %v356 = vld [vmem:[#allocation2 + $0x68] sm:$0xf]
        %v357 = vld [vmem:[#allocation2 + $0x6c] sm:$0xff]
        %v358 = vld [vmem:[#allocation2 + $0x74] sm:$0xf]
        %v359 = vld [vmem:[#allocation2 + $0x78] sm:$0xff]
        %v360 = vld [vmem:[#allocation2 + $0x80] sm:$0xf]
        %v361 = vld [vmem:[#allocation2 + $0x84] sm:$0xff]
        %v362 = vld [vmem:[#allocation2 + $0x8c] sm:$0xf]
        %v363 = vld [vmem:[#allocation2 + $0x90] sm:$0xff]
        %v364 = vld [vmem:[#allocation2 + $0x98] sm:$0xf]
        %v365 = vld [vmem:[#allocation2 + $0x9c] sm:$0xff]
        %v366 = vld [vmem:[#allocation2 + $0xa4] sm:$0xf]
        %v367 = vld [vmem:[#allocation2 + $0xa8] sm:$0xff]
        %v368 = vld [vmem:[#allocation2 + $0xb0] sm:$0xf]
        %v369 = vld [vmem:[#allocation2 + $0xb4] sm:$0xff]
        %v370 = vld [vmem:[#allocation2 + $0xbc] sm:$0xf]
        %v375 = vunpack.c.l.b16 %v335
        %v376 = vunpack.c.l.b16 %v336
        %v377 = vunpack.c.l.b16 %v337
        %v378 = vunpack.c.l.b16 %v338
        %v379 = vpack.c.b16 %v376, %v375
        %v380 = vpack.c.b16 %v378, %v377
        %v415 = vunpack.c.l.b16 %v339
        %v416 = vunpack.c.h.b16 %v339
        %v417 = vunpack.c.l.b16 %v340
        %v418 = vunpack.c.l.b16 %v341
        %v419 = vunpack.c.h.b16 %v341
        %v420 = vunpack.c.l.b16 %v342
        %v421 = vunpack.c.l.b16 %v343
        %v422 = vunpack.c.h.b16 %v343
        %v423 = vunpack.c.l.b16 %v344
        %v424 = vunpack.c.l.b16 %v345
        %v425 = vunpack.c.h.b16 %v345
        %v426 = vunpack.c.l.b16 %v346
        %v427 = vunpack.c.l.b16 %v347
        %v428 = vunpack.c.h.b16 %v347
        %v429 = vunpack.c.l.b16 %v348
        %v430 = vunpack.c.l.b16 %v349
        %v431 = vunpack.c.h.b16 %v349
        %v432 = vunpack.c.l.b16 %v350
        %v433 = vunpack.c.l.b16 %v351
        %v434 = vunpack.c.h.b16 %v351
        %v435 = vunpack.c.l.b16 %v352
        %v436 = vunpack.c.l.b16 %v353
        %v437 = vunpack.c.h.b16 %v353
        %v438 = vunpack.c.l.b16 %v354
        %v439 = vunpack.c.l.b16 %v355
        %v440 = vunpack.c.h.b16 %v355
        %v441 = vunpack.c.l.b16 %v356
        %v442 = vunpack.c.l.b16 %v357
        %v443 = vunpack.c.h.b16 %v357
        %v444 = vunpack.c.l.b16 %v358
        %v445 = vunpack.c.l.b16 %v359
        %v446 = vunpack.c.h.b16 %v359
        %v447 = vunpack.c.l.b16 %v360
        %v448 = vunpack.c.l.b16 %v361
        %v449 = vunpack.c.h.b16 %v361
        %v450 = vunpack.c.l.b16 %v362
        %v451 = vunpack.c.l.b16 %v363
        %v452 = vunpack.c.h.b16 %v363
        %v453 = vunpack.c.l.b16 %v364
        %v454 = vunpack.c.l.b16 %v365
        %v455 = vunpack.c.h.b16 %v365
        %v456 = vunpack.c.l.b16 %v366
        %v457 = vunpack.c.l.b16 %v367
        %v458 = vunpack.c.h.b16 %v367
        %v459 = vunpack.c.l.b16 %v368
        %v460 = vunpack.c.l.b16 %v369
        %v461 = vunpack.c.h.b16 %v369
        %v462 = vunpack.c.l.b16 %v370
        %v463 = vpack.c.b16 %v418, %v415
        %v464 = vpack.c.b16 %v419, %v416
        %v465 = vpack.c.b16 %v420, %v417
        %v466 = vpack.c.b16 %v424, %v421
        %v467 = vpack.c.b16 %v425, %v422
        %v468 = vpack.c.b16 %v426, %v423
        %v469 = vpack.c.b16 %v430, %v427
        %v470 = vpack.c.b16 %v431, %v428
        %v471 = vpack.c.b16 %v432, %v429
        %v472 = vpack.c.b16 %v436, %v433
        %v473 = vpack.c.b16 %v437, %v434
        %v474 = vpack.c.b16 %v438, %v435
        %v475 = vpack.c.b16 %v442, %v439
        %v476 = vpack.c.b16 %v443, %v440
        %v477 = vpack.c.b16 %v444, %v441
        %v478 = vpack.c.b16 %v448, %v445
        %v479 = vpack.c.b16 %v449, %v446
        %v480 = vpack.c.b16 %v450, %v447
        %v481 = vpack.c.b16 %v454, %v451
        %v482 = vpack.c.b16 %v455, %v452
        %v483 = vpack.c.b16 %v456, %v453
        %v484 = vpack.c.b16 %v460, %v457
        %v485 = vpack.c.b16 %v461, %v458
        %v486 = vpack.c.b16 %v462, %v459
        %511 = vmatpush.bf16.msra.mxu0 %v484
        %512 = vmatpush.bf16.msra.mxu0 %v481
        %513 = vmatpush.bf16.msra.mxu0 %v478
        %514 = vmatpush.bf16.msra.mxu0 %v475
        %515 = vmatpush.bf16.msra.mxu0 %v472
        %516 = vmatpush.bf16.msra.mxu0 %v469
        %517 = vmatpush.bf16.msra.mxu0 %v466
        %518 = vmatpush.bf16.msra.mxu0 %v463
        %519 = vmatmul.bf16.gmra.mxu0 %v379
        %v520 = vpop.f32.mrf.mxu0
        %v521 = vadd.f32 0.0, %v520
        %v522 = vpop.f32.mrf.mxu0
        %v523 = vadd.f32 0.0, %v522
        %524 = vmatmul.bf16.gmra.mxu0 %v380
        %v525 = vpop.f32.mrf.mxu0
        %v526 = vadd.f32 0.0, %v525
        %v527 = vpop.f32.mrf.mxu0
        %v528 = vadd.f32 0.0, %v527
        %529 = vdwg.mxu0
        %530 = vmatpush.bf16.msra.mxu0 %v485
        %531 = vmatpush.bf16.msra.mxu0 %v482
        %532 = vmatpush.bf16.msra.mxu0 %v479
        %533 = vmatpush.bf16.msra.mxu0 %v476
        %534 = vmatpush.bf16.msra.mxu0 %v473
        %535 = vmatpush.bf16.msra.mxu0 %v470
        %536 = vmatpush.bf16.msra.mxu0 %v467
        %537 = vmatpush.bf16.msra.mxu0 %v464
        %538 = vmatmul.bf16.gmra.mxu0 %v379
        %v539 = vpop.f32.mrf.mxu0
        %v540 = vadd.f32 0.0, %v539
        %v541 = vpop.f32.mrf.mxu0
        %v542 = vadd.f32 0.0, %v541
        %543 = vmatmul.bf16.gmra.mxu0 %v380
        %v544 = vpop.f32.mrf.mxu0
        %v545 = vadd.f32 0.0, %v544
        %v546 = vpop.f32.mrf.mxu0
        %v547 = vadd.f32 0.0, %v546
        %548 = vdwg.mxu0
        %549 = vmatpush.bf16.msra.mxu0 %v486
        %550 = vmatpush.bf16.msra.mxu0 %v483
        %551 = vmatpush.bf16.msra.mxu0 %v480
        %552 = vmatpush.bf16.msra.mxu0 %v477
        %553 = vmatpush.bf16.msra.mxu0 %v474
        %554 = vmatpush.bf16.msra.mxu0 %v471
        %555 = vmatpush.bf16.msra.mxu0 %v468
        %556 = vmatpush.bf16.msra.mxu0 %v465
        %557 = vmatmul.bf16.gmra.mxu0 %v379
        %v558 = vpop.f32.mrf.mxu0
        %v559 = vadd.f32 0.0, %v558
        %v560 = vpop.f32.mrf.mxu0
        %v561 = vadd.f32 0.0, %v560
        %562 = vmatmul.bf16.gmra.mxu0 %v380
        %v563 = vpop.f32.mrf.mxu0
        %v564 = vadd.f32 0.0, %v563
        %v565 = vpop.f32.mrf.mxu0
        %v566 = vadd.f32 0.0, %v565
        %567 = vdwg.mxu0
        %v568 = vld [vmem:[%s4] sm:$0x1]
        %v570 = vperm.slane %v568, 0
        %v572 = vadd.f32 %v521, %v570
        %v573 = vadd.f32 %v523, %v570
        %v574 = vadd.f32 %v526, %v570
        %v575 = vadd.f32 %v528, %v570
        %v576 = vpack.c.bf16 %v540, %v540
        %v577 = vpack.c.bf16 %v542, %v542
        %v578 = vpack.c.bf16 %v545, %v545
        %v579 = vpack.c.bf16 %v547, %v547
        %v580 = vpack.c.bf16 %v559, %v559
        %v581 = vpack.c.bf16 %v561, %v561
        %v582 = vpack.c.bf16 %v564, %v564
        %v583 = vpack.c.bf16 %v566, %v566
        %v584 = vpack.c.bf16 %v572, %v572
        %v585 = vpack.c.bf16 %v573, %v573
        %v586 = vpack.c.bf16 %v574, %v574
        %v587 = vpack.c.bf16 %v575, %v575
        %v588 = vld [vmem:[%s326] sm:$0xff]
        %v589 = vld [vmem:[%s326 + $0x8] sm:$0xff]
        %v590 = vld [vmem:[%s326 + $0x10] sm:$0xff]
        %v591 = vld [vmem:[%s326 + $0x18] sm:$0xff]
        %v592 = vld [vmem:[%s331] sm:$0x1]
        %v593 = vld [vmem:[%s331 + $0x1] sm:$0x1]
        %595 = vset.pattern.permute.xlu0 0
        %596 = vperm.xlu0 %595, %v588
        %v597 = vpop.permute.xlu0 %596
        %600 = vset.pattern.permute.xlu0 0
        %601 = vperm.xlu0 %600, %v589
        %v602 = vpop.permute.xlu0 %601
        %605 = vset.pattern.permute.xlu0 0
        %606 = vperm.xlu0 %605, %v590
        %v607 = vpop.permute.xlu0 %606
        %610 = vset.pattern.permute.xlu0 0
        %611 = vperm.xlu0 %610, %v591
        %v612 = vpop.permute.xlu0 %611
        %v616 = vperm.slane %v592, 0
        %v617 = vperm.slane %v593, 0
        %v620 = vmul.f32 %v597, %v616
        %v621 = vmul.f32 %v602, %v616
        %v622 = vmul.f32 %v607, %v617
        %v623 = vmul.f32 %v612, %v617
        %v626 = vunpack.c.l.b16 %v584
        %v627 = vunpack.c.l.b16 %v585
        %v628 = vpack.c.b16 %v627, %v626
        %630 = vmatpush.bf16.xpose.msra.mxu0 0
        %631 = vmatpush.bf16.xpose.msra.mxu0 0
        %632 = vmatpush.bf16.xpose.msra.mxu0 0
        %633 = vmatpush.bf16.xpose.msra.mxu0 0
        %634 = vmatpush.bf16.xpose.msra.mxu0 0
        %635 = vmatpush.bf16.xpose.msra.mxu0 0
        %636 = vmatpush.bf16.xpose.msra.mxu0 0
        %637 = vmatpush.bf16.xpose.msra.mxu0 %v379
        %638 = vmatmul.bf16.gmra.mxu0 %v628
        %v639 = vpop.f32.mrf.mxu0
        %v640 = vadd.f32 %v620, %v639
        %v641 = vpop.f32.mrf.mxu0
        %v642 = vadd.f32 %v621, %v641
        %643 = vdwg.mxu0
        %v646 = vunpack.c.l.b16 %v586
        %v647 = vunpack.c.l.b16 %v587
        %v648 = vpack.c.b16 %v647, %v646
        %650 = vmatpush.bf16.xpose.msra.mxu0 0
        %651 = vmatpush.bf16.xpose.msra.mxu0 0
        %652 = vmatpush.bf16.xpose.msra.mxu0 0
        %653 = vmatpush.bf16.xpose.msra.mxu0 0
        %654 = vmatpush.bf16.xpose.msra.mxu0 0
        %655 = vmatpush.bf16.xpose.msra.mxu0 0
        %656 = vmatpush.bf16.xpose.msra.mxu0 0
        %657 = vmatpush.bf16.xpose.msra.mxu0 %v380
        %658 = vmatmul.bf16.gmra.mxu0 %v648
        %v659 = vpop.f32.mrf.mxu0
        %v660 = vadd.f32 %v622, %v659
        %v661 = vpop.f32.mrf.mxu0
        %v662 = vadd.f32 %v623, %v661
        %663 = vdwg.mxu0
        %v664 = vlaneseq
        %v665 = vand.u32 %v664, 127
        %vm666 = vcmp.lt.s32.totalorder %v665, 8
        %v667 = vsel %vm666, 1, 0
        %vm668 = vcmp.eq.s32.totalorder %v667, 1
        %v669 = vsel %vm668, %v640, -1e+09
        %v670 = vsel %vm668, %v642, -1e+09
        %v671 = vsel %vm668, %v660, -1e+09
        %v672 = vsel %vm668, %v662, -1e+09
        %vm673 = vcmask 130048
        %v674 = vsel %vm673, %v669, -inf
        %675 = vmax.xlane.f32.xlu0 %v674
        %v676 = vpop.xlane.xlu0 %675
        %v677 = vsel %vm673, %v670, -inf
        %678 = vmax.xlane.f32.xlu0 %v677
        %v679 = vpop.xlane.xlu0 %678
        %v680 = vsel %vm673, %v671, -inf
        %681 = vmax.xlane.f32.xlu0 %v680
        %v682 = vpop.xlane.xlu0 %681
        %v683 = vsel %vm673, %v672, -inf
        %684 = vmax.xlane.f32.xlu0 %v683
        %v685 = vpop.xlane.xlu0 %684
        %v686 = vsub.f32 %v669, %v676
        %v687 = vsub.f32 %v670, %v679
        %v688 = vsub.f32 %v671, %v682
        %v689 = vsub.f32 %v672, %v685
        %v690 = vmul.f32 %v686, 1.442695
        %v691 = vpow.pop %v690
        %v692 = vmul.f32 %v687, 1.442695
        %v693 = vpow.pop %v692
        %v694 = vmul.f32 %v688, 1.442695
        %v695 = vpow.pop %v694
        %v696 = vmul.f32 %v689, 1.442695
        %v697 = vpow.pop %v696
        %v698 = vsel %vm673, %v691, 0.0
        %699 = vadd.xlane.f32.xlu0 %v698
        %v700 = vpop.xlane.xlu0 %699
        %v701 = vsel %vm673, %v693, 0.0
        %702 = vadd.xlane.f32.xlu0 %v701
        %v703 = vpop.xlane.xlu0 %702
        %v704 = vsel %vm673, %v695, 0.0
        %705 = vadd.xlane.f32.xlu0 %v704
        %v706 = vpop.xlane.xlu0 %705
        %v707 = vsel %vm673, %v697, 0.0
        %708 = vadd.xlane.f32.xlu0 %v707
        %v709 = vpop.xlane.xlu0 %708
        %v710 = vrcp.pop %v700
        %v711 = vrcp.pop %v703
        %v712 = vrcp.pop %v706
        %v713 = vrcp.pop %v709
        %v714 = vmul.f32 %v691, %v710
        %v715 = vmul.f32 %v693, %v711
        %v716 = vmul.f32 %v695, %v712
        %v717 = vmul.f32 %v697, %v713
        %v718 = vpack.c.bf16 %v714, %v714
        %v719 = vpack.c.bf16 %v715, %v715
        %v720 = vpack.c.bf16 %v716, %v716
        %v721 = vpack.c.bf16 %v717, %v717
        %v724 = vunpack.c.l.b16 %v718
        %v725 = vunpack.c.l.b16 %v719
        %v726 = vpack.c.b16 %v725, %v724
        %v728 = vsel %vm673, %v726, 0
        %730 = vmatpush.bf16.msra.mxu0 0
        %731 = vmatpush.bf16.msra.mxu0 0
        %732 = vmatpush.bf16.msra.mxu0 0
        %733 = vmatpush.bf16.msra.mxu0 0
        %734 = vmatpush.bf16.msra.mxu0 0
        %735 = vmatpush.bf16.msra.mxu0 0
        %736 = vmatpush.bf16.msra.mxu0 0
        %737 = vmatpush.bf16.msra.mxu0 %v379
        %738 = vmatmul.bf16.gmra.mxu0 %v728
        %v739 = vpop.f32.mrf.mxu0
        %v740 = vadd.f32 0.0, %v739
        %v741 = vpop.f32.mrf.mxu0
        %v742 = vadd.f32 0.0, %v741
        %743 = vdwg.mxu0
        %v746 = vunpack.c.l.b16 %v720
        %v747 = vunpack.c.l.b16 %v721
        %v748 = vpack.c.b16 %v747, %v746
        %v750 = vsel %vm673, %v748, 0
        %752 = vmatpush.bf16.msra.mxu0 0
        %753 = vmatpush.bf16.msra.mxu0 0
        %754 = vmatpush.bf16.msra.mxu0 0
        %755 = vmatpush.bf16.msra.mxu0 0
        %756 = vmatpush.bf16.msra.mxu0 0
        %757 = vmatpush.bf16.msra.mxu0 0
        %758 = vmatpush.bf16.msra.mxu0 0
        %759 = vmatpush.bf16.msra.mxu0 %v380
        %760 = vmatmul.bf16.gmra.mxu0 %v750
        %v761 = vpop.f32.mrf.mxu0
        %v762 = vadd.f32 0.0, %v761
        %v763 = vpop.f32.mrf.mxu0
        %v764 = vadd.f32 0.0, %v763
        %765 = vdwg.mxu0
        %v766 = vpack.c.bf16 %v740, %v740
        %v767 = vpack.c.bf16 %v742, %v742
        %v768 = vpack.c.bf16 %v762, %v762
        %v769 = vpack.c.bf16 %v764, %v764
        %v770 = vld [vmem:[#allocation5] sm:$0xff]
        %v771 = vld [vmem:[#allocation5 + $0x8] sm:$0xff]
        %v772 = vld [vmem:[#allocation5 + $0x10] sm:$0xff]
        %v773 = vld [vmem:[#allocation5 + $0x18] sm:$0xff]
        %v774 = vld [vmem:[#allocation5 + $0x20] sm:$0xff]
        %v775 = vld [vmem:[#allocation5 + $0x28] sm:$0xff]
        %v776 = vld [vmem:[#allocation5 + $0x30] sm:$0xff]
        %v777 = vld [vmem:[#allocation5 + $0x38] sm:$0xff]
        %v778 = vld [vmem:[#allocation5 + $0x40] sm:$0xff]
        %v779 = vld [vmem:[#allocation5 + $0x48] sm:$0xff]
        %v780 = vld [vmem:[#allocation5 + $0x50] sm:$0xff]
        %v781 = vld [vmem:[#allocation5 + $0x58] sm:$0xff]
        %v782 = vld [vmem:[#allocation5 + $0x60] sm:$0xff]
        %v783 = vld [vmem:[#allocation5 + $0x68] sm:$0xff]
        %v784 = vld [vmem:[#allocation5 + $0x70] sm:$0xff]
        %v785 = vld [vmem:[#allocation5 + $0x78] sm:$0xff]
        %v790 = vunpack.c.l.b16 %v766
        %v791 = vunpack.c.l.b16 %v767
        %v792 = vunpack.c.l.b16 %v768
        %v793 = vunpack.c.l.b16 %v769
        %v794 = vpack.c.b16 %v791, %v790
        %v795 = vpack.c.b16 %v793, %v792
        %v814 = vunpack.c.l.b16 %v770
        %v815 = vunpack.c.h.b16 %v770
        %v816 = vunpack.c.l.b16 %v771
        %v817 = vunpack.c.h.b16 %v771
        %v818 = vunpack.c.l.b16 %v772
        %v819 = vunpack.c.h.b16 %v772
        %v820 = vunpack.c.l.b16 %v773
        %v821 = vunpack.c.h.b16 %v773
        %v822 = vunpack.c.l.b16 %v774
        %v823 = vunpack.c.h.b16 %v774
        %v824 = vunpack.c.l.b16 %v775
        %v825 = vunpack.c.h.b16 %v775
        %v826 = vunpack.c.l.b16 %v776
        %v827 = vunpack.c.h.b16 %v776
        %v828 = vunpack.c.l.b16 %v777
        %v829 = vunpack.c.h.b16 %v777
        %v830 = vunpack.c.l.b16 %v778
        %v831 = vunpack.c.h.b16 %v778
        %v832 = vunpack.c.l.b16 %v779
        %v833 = vunpack.c.h.b16 %v779
        %v834 = vunpack.c.l.b16 %v780
        %v835 = vunpack.c.h.b16 %v780
        %v836 = vunpack.c.l.b16 %v781
        %v837 = vunpack.c.h.b16 %v781
        %v838 = vunpack.c.l.b16 %v782
        %v839 = vunpack.c.h.b16 %v782
        %v840 = vunpack.c.l.b16 %v783
        %v841 = vunpack.c.h.b16 %v783
        %v842 = vunpack.c.l.b16 %v784
        %v843 = vunpack.c.h.b16 %v784
        %v844 = vunpack.c.l.b16 %v785
        %v845 = vunpack.c.h.b16 %v785
        %v846 = vpack.c.b16 %v816, %v814
        %v847 = vpack.c.b16 %v817, %v815
        %v848 = vpack.c.b16 %v820, %v818
        %v849 = vpack.c.b16 %v821, %v819
        %v850 = vpack.c.b16 %v824, %v822
        %v851 = vpack.c.b16 %v825, %v823
        %v852 = vpack.c.b16 %v828, %v826
        %v853 = vpack.c.b16 %v829, %v827
        %v854 = vpack.c.b16 %v832, %v830
        %v855 = vpack.c.b16 %v833, %v831
        %v856 = vpack.c.b16 %v836, %v834
        %v857 = vpack.c.b16 %v837, %v835
        %v858 = vpack.c.b16 %v840, %v838
        %v859 = vpack.c.b16 %v841, %v839
        %v860 = vpack.c.b16 %v844, %v842
        %v861 = vpack.c.b16 %v845, %v843
        %878 = vmatpush.bf16.msra.mxu0 %v860
        %879 = vmatpush.bf16.msra.mxu0 %v858
        %880 = vmatpush.bf16.msra.mxu0 %v856
        %881 = vmatpush.bf16.msra.mxu0 %v854
        %882 = vmatpush.bf16.msra.mxu0 %v852
        %883 = vmatpush.bf16.msra.mxu0 %v850
        %884 = vmatpush.bf16.msra.mxu0 %v848
        %885 = vmatpush.bf16.msra.mxu0 %v846
        %886 = vmatmul.bf16.gmra.mxu0 %v794
        %v887 = vpop.f32.mrf.mxu0
        %v888 = vadd.f32 0.0, %v887
        %v889 = vpop.f32.mrf.mxu0
        %v890 = vadd.f32 0.0, %v889
        %891 = vmatmul.bf16.gmra.mxu0 %v795
        %v892 = vpop.f32.mrf.mxu0
        %v893 = vadd.f32 0.0, %v892
        %v894 = vpop.f32.mrf.mxu0
        %v895 = vadd.f32 0.0, %v894
        %896 = vdwg.mxu0
        %897 = vmatpush.bf16.msra.mxu0 %v861
        %898 = vmatpush.bf16.msra.mxu0 %v859
        %899 = vmatpush.bf16.msra.mxu0 %v857
        %900 = vmatpush.bf16.msra.mxu0 %v855
        %901 = vmatpush.bf16.msra.mxu0 %v853
        %902 = vmatpush.bf16.msra.mxu0 %v851
        %903 = vmatpush.bf16.msra.mxu0 %v849
        %904 = vmatpush.bf16.msra.mxu0 %v847
        %905 = vmatmul.bf16.gmra.mxu0 %v794
        %v906 = vpop.f32.mrf.mxu0
        %v907 = vadd.f32 0.0, %v906
        %v908 = vpop.f32.mrf.mxu0
        %v909 = vadd.f32 0.0, %v908
        %910 = vmatmul.bf16.gmra.mxu0 %v795
        %v911 = vpop.f32.mrf.mxu0
        %v912 = vadd.f32 0.0, %v911
        %v913 = vpop.f32.mrf.mxu0
        %v914 = vadd.f32 0.0, %v913
        %915 = vdwg.mxu0
        %v916 = vunpack.c.l.bf16 %v576
        %v917 = vunpack.c.l.bf16 %v577
        %v918 = vunpack.c.l.bf16 %v578
        %v919 = vunpack.c.l.bf16 %v579
        %v920 = vadd.f32 %v916, %v888
        %v921 = vadd.f32 %v917, %v890
        %v922 = vadd.f32 %v918, %v893
        %v923 = vadd.f32 %v919, %v895
        %v924 = vtanh.pop %v920
        %v925 = vtanh.pop %v921
        %v926 = vtanh.pop %v922
        %v927 = vtanh.pop %v923
        %v928 = vunpack.c.l.bf16 %v580
        %v929 = vunpack.c.l.bf16 %v581
        %v930 = vunpack.c.l.bf16 %v582
        %v931 = vunpack.c.l.bf16 %v583
        %v932 = vadd.f32 %v928, %v907
        %v933 = vadd.f32 %v929, %v909
        %v934 = vadd.f32 %v930, %v912
        %v935 = vadd.f32 %v931, %v914
        %v936 = vxor.u32 %v932, 2147483648
        %v937 = vxor.u32 %v933, 2147483648
        %v938 = vxor.u32 %v934, 2147483648
        %v939 = vxor.u32 %v935, 2147483648
        %v940 = vmul.f32 %v936, 1.442695
        %v941 = vpow.pop %v940
        %v942 = vmul.f32 %v937, 1.442695
        %v943 = vpow.pop %v942
        %v944 = vmul.f32 %v938, 1.442695
        %v945 = vpow.pop %v944
        %v946 = vmul.f32 %v939, 1.442695
        %v947 = vpow.pop %v946
        %v948 = vadd.f32 %v941, 1.0
        %v949 = vadd.f32 %v943, 1.0
        %v950 = vadd.f32 %v945, 1.0
        %v951 = vadd.f32 %v947, 1.0
        %v952 = vrcp.pop %v948
        %v953 = vmul.f32 %v948, %v952
        %v954 = vsub.f32 1.0, %v953
        %v955 = vmul.f32 %v952, %v954
        %v956 = vadd.f32 %v952, %v955
        %vm957 = vweird.f32 %v948
        %vm958 = vweird.f32 %v952
        %vm959 = vmor %vm957, %vm958
        %v960 = vsel %vm959, %v952, %v956
        %v961 = vand.u32 2147483647, %v948
        %vm962 = vcmp.eq.f32.partialorder %v961, 8.507059e+37
        %v963 = vand.u32 %v948, 2147483648
        %v964 = vor.u32 1.1754944e-38, %v963
        %v965 = vsel %vm962, %v964, %v960
        %v966 = vmul.f32 1.0, %v965
        %v967 = vrcp.pop %v949
        %v968 = vmul.f32 %v949, %v967
        %v969 = vsub.f32 1.0, %v968
        %v970 = vmul.f32 %v967, %v969
        %v971 = vadd.f32 %v967, %v970
        %vm972 = vweird.f32 %v949
        %vm973 = vweird.f32 %v967
        %vm974 = vmor %vm972, %vm973
        %v975 = vsel %vm974, %v967, %v971
        %v976 = vand.u32 2147483647, %v949
        %vm977 = vcmp.eq.f32.partialorder %v976, 8.507059e+37
        %v978 = vand.u32 %v949, 2147483648
        %v979 = vor.u32 1.1754944e-38, %v978
        %v980 = vsel %vm977, %v979, %v975
        %v981 = vmul.f32 1.0, %v980
        %v982 = vrcp.pop %v950
        %v983 = vmul.f32 %v950, %v982
        %v984 = vsub.f32 1.0, %v983
        %v985 = vmul.f32 %v982, %v984
        %v986 = vadd.f32 %v982, %v985
        %vm987 = vweird.f32 %v950
        %vm988 = vweird.f32 %v982
        %vm989 = vmor %vm987, %vm988
        %v990 = vsel %vm989, %v982, %v986
        %v991 = vand.u32 2147483647, %v950
        %vm992 = vcmp.eq.f32.partialorder %v991, 8.507059e+37
        %v993 = vand.u32 %v950, 2147483648
        %v994 = vor.u32 1.1754944e-38, %v993
        %v995 = vsel %vm992, %v994, %v990
        %v996 = vmul.f32 1.0, %v995
        %v997 = vrcp.pop %v951
        %v998 = vmul.f32 %v951, %v997
        %v999 = vsub.f32 1.0, %v998
        %v1000 = vmul.f32 %v997, %v999
        %v1001 = vadd.f32 %v997, %v1000
        %vm1002 = vweird.f32 %v951
        %vm1003 = vweird.f32 %v997
        %vm1004 = vmor %vm1002, %vm1003
        %v1005 = vsel %vm1004, %v997, %v1001
        %v1006 = vand.u32 2147483647, %v951
        %vm1007 = vcmp.eq.f32.partialorder %v1006, 8.507059e+37
        %v1008 = vand.u32 %v951, 2147483648
        %v1009 = vor.u32 1.1754944e-38, %v1008
        %v1010 = vsel %vm1007, %v1009, %v1005
        %v1011 = vmul.f32 1.0, %v1010
        %v1012 = vunpack.c.l.bf16 %v335
        %v1013 = vunpack.c.l.bf16 %v336
        %v1014 = vunpack.c.l.bf16 %v337
        %v1015 = vunpack.c.l.bf16 %v338
        %v1016 = vsub.f32 %v924, %v1012
        %v1017 = vsub.f32 %v925, %v1013
        %v1018 = vsub.f32 %v926, %v1014
        %v1019 = vsub.f32 %v927, %v1015
        %v1020 = vmul.f32 %v966, %v1016
        %v1021 = vmul.f32 %v981, %v1017
        %v1022 = vmul.f32 %v996, %v1018
        %v1023 = vmul.f32 %v1011, %v1019
        %v1024 = vadd.f32 %v1012, %v1020
        %v1025 = vadd.f32 %v1013, %v1021
        %v1026 = vadd.f32 %v1014, %v1022
        %v1027 = vadd.f32 %v1015, %v1023
        %1028 = vst [vmem:[%s313] sm:$0xff] %v1024
        %1029 = vst [vmem:[%s313 + $0x8] sm:$0xff] %v1025
        %1030 = vst [vmem:[%s313 + $0x10] sm:$0xff] %v1026
        %1031 = vst [vmem:[%s313 + $0x18] sm:$0xff] %v1027
        %s1032 = sand.u32 %s171, 1
        %s1033 = scalar_lea.sflag [#allocation4], %s1032
        %s1034 = sand.u32 %s171, 1
        %s1035 = smul.addr %s1034, 32
        %s1036 = scalar_lea.vmem [#allocation7], %s1035
        // Predicated region
        $region53: #{tpu_custom_call.1} parent=43 // pred_check
          %p1037 = pneg %p181
        $region54: #{tpu_custom_call.1} parent=43 // pred_check_branch
          %1039 = sbr.rel (%p1037) target = $region56
        $region55: #{tpu_custom_call.1} parent=43 // pred_region
          %s1040 = smul.u32 2, %s22
          %1042 = vsyncadd %s1033, 0
          %s1043 = smul.addr %s1040, 2
          %s1044 = smul.addr %s1043, 8
          %s1045 = scalar_lea.hbm %s6, %s1044
          %s1046 = sshll.u32 %s1036, 4
          %s1047 = int_to_ptr.vmem [resolvable:$true] %s1046
          %s1048 = sshll.u32 %s1045, 4
          %s1049 = int_to_ptr.hbm [resolvable:$true] %s1048
          %1054 = dma.vmem_to_hbm [thread:$0]  %s1047, 512, %s1049, %s1033, 128, 128, 8
        $region56: #{tpu_custom_call.1} parent=43 // pred_fallthru
          _
      $region44: #{tpu_custom_call.1} parent=5 // pred_fallthru
        _
      %p1055 = scmp.le.s32.totalorder 2, %s17
      // Predicated region
      $region57: #{tpu_custom_call.1} parent=5 // pred_check
        %p1056 = pneg %p1055
      $region58: #{tpu_custom_call.1} parent=5 // pred_check_branch
        %1058 = sbr.rel (%p1056) target = $region60
      $region59: #{tpu_custom_call.1} parent=5 // pred_region
        %s1059 = ssub.s32 %s17, 2
        // Predicated region
        $region61: #{tpu_custom_call.1} parent=59 // pred_check
          %p1060 = pneg %p187
        $region62: #{tpu_custom_call.1} parent=59 // pred_check_branch
          %1062 = sbr.rel (%p1060) target = $region64
        $region63: #{tpu_custom_call.1} parent=59 // pred_region
          %s1063 = sand.u32 %s172, 1
          %s1064 = scalar_lea.sflag [#allocation4], %s1063
          %s1065 = sand.u32 %s172, 1
          %s1066 = smul.addr %s1065, 32
          %s1067 = scalar_lea.vmem [#allocation7], %s1066
          %1069 = dma.done %s1064, 512
        $region64: #{tpu_custom_call.1} parent=59 // pred_fallthru
          _
      $region60: #{tpu_custom_call.1} parent=5 // pred_fallthru
        _
    $region6: #{tpu_custom_call.1} parent=1 // loop_footer
      %s21 = sadd.s32 1, %s17
    $region7: #{tpu_custom_call.1} parent=1 // loop_footer_branch
      %16 = sbr.rel target = $region3
    $region8: #{tpu_custom_call.1} parent=1 // loop_exit
      _
    %1070 = vsyncpa [#allocation3], 1
    %s1071 = scalar_lea.sflag [#allocation3], 1
    %1072 = vsyncpa %s1071, 1
    %1073 = vsyncpa [#allocation6], 1
    %1074 = vsyncpa [#allocation4], 1
    %s1075 = scalar_lea.sflag [#allocation4], 1
    %1076 = vsyncpa %s1075, 1

</llo_original>
